<compile_context>
chip_gen: v5e
topology: v5e:2x2
jax: 0.10.0
libtpu: 0.0.40
codegen_flags: <defaults>
</compile_context>

<pallas_src>
import jax
import jax.numpy as jnp
from jax import lax
from jax.experimental import pallas as pl
from jax.experimental.pallas import tpu as pltpu


# ----------------------------------------------------------------------------
# Fused Pallas kernel: embedding-mean + positional enc + transformer layer
# ----------------------------------------------------------------------------
def id_encoder_kernel(tok_ref, emb_ref, pe_ref, mask_ref, hm_ref,
                      wq_ref, bq_ref, wk_ref, bk_ref, wv_ref, bv_ref,
                      wo_ref, bo_ref, ln1g_ref, ln1b_ref,
                      w1_ref, b1_ref, w2_ref, b2_ref, ln2g_ref, ln2b_ref,
                      o_ref):
    """Processes a tile of Bt batch elements (rows are (batch, usage)-major).

    tok_ref : (Bt*U, L) int32 token ids (row r -> batch r//U, usage r%U)
    emb_ref : (V, E)    embedding table (padding_idx row is zero)
    pe_ref  : (U, E)    sinusoidal positional encoding
    mask_ref: (Bt, U)   additive key-padding mask (0 or -1e9)
    hm_ref  : (H*U, E)  head column mask: hm[h*U+q, c] = (c // dh == h)
    weights : pre-transposed so the kernel computes y = x @ W + b
    o_ref   : (Bt*U, E)
    """
    V, E = emb_ref.shape
    U = pe_ref.shape[0]
    L = tok_ref.shape[1]
    n_rows = tok_ref.shape[0]
    Bt = n_rows // U
    H = hm_ref.shape[0] // U
    dh = E // H
    scale = 1.0 / (float(dh) ** 0.5)

    # --- fused embedding gather + mean over L: (counts @ emb) / L  (MXU) ----
    tok = tok_ref[...]                                          # (Bt*U, L)
    vocab_iota = lax.broadcasted_iota(jnp.int32, (n_rows, V), 1)
    counts = (tok[:, 0:1] == vocab_iota).astype(jnp.float32)
    for l in range(1, L):                                       # static unroll, tiny VPU ops
        counts = counts + (tok[:, l:l + 1] == vocab_iota).astype(jnp.float32)
    x = jnp.dot(counts, emb_ref[...],
                preferred_element_type=jnp.float32) * (1.0 / float(L))

    # --- positional encoding (usage position = row % U) ---------------------
    pe = pe_ref[...]
    pe_t = pe if Bt == 1 else jnp.concatenate([pe] * Bt, axis=0)
    x = x + pe_t                                                # (Bt*U, E)

    # --- Q/K/V projections over all Bt*U rows (one MXU dot each) ------------
    def linear(t, w_ref, b_ref):
        return jnp.dot(t, w_ref[...],
                       preferred_element_type=jnp.float32) + b_ref[...]

    q = linear(x, wq_ref, bq_ref)
    k = linear(x, wk_ref, bk_ref)
    v = linear(x, wv_ref, bv_ref)

    hm = hm_ref[...]                                            # (H*U, E)
    mask = mask_ref[...]                                        # (Bt, U)

    # --- attention: all H heads stacked along sublanes; per-batch (H*U,U) ---
    attn_rows = []
    for b in range(Bt):                                         # static unroll, slices 8-aligned
        r0, r1 = b * U, (b + 1) * U
        q_b, k_b, v_b = q[r0:r1], k[r0:r1], v[r0:r1]            # (U, E) each
        # q_stk[h*U + i, :] = q_b[i, :] masked to head h's columns, so the
        # single (H*U,E)@(E,U) dot yields all H per-head score blocks at once.
        q_stk = jnp.concatenate([q_b] * H, axis=0) * hm         # (H*U, E)
        s = lax.dot_general(q_stk, k_b, (((1,), (1,)), ((), ())),
                            preferred_element_type=jnp.float32) * scale
        s = s + mask[b:b + 1, :]                                # (H*U, U) + (1, U)
        s = s - jnp.max(s, axis=-1, keepdims=True)              # single stable softmax
        p = jnp.exp(s)
        p = p * pl.reciprocal(jnp.sum(p, axis=-1, keepdims=True), approx=True)
        o_full = jnp.dot(p, v_b, preferred_element_type=jnp.float32) * hm
        o_b = o_full[0:U]                                       # fold heads back into E
        for h in range(1, H):
            o_b = o_b + o_full[h * U:(h + 1) * U]
        attn_rows.append(o_b)
    attn = attn_rows[0] if Bt == 1 else jnp.concatenate(attn_rows, axis=0)
    attn = linear(attn, wo_ref, bo_ref)                         # output projection

    # --- post-norm residual blocks (PyTorch TransformerEncoderLayer) --------
    def layer_norm(t, g_ref, b_ref, eps=1e-5):
        mu = jnp.mean(t, axis=-1, keepdims=True)
        var = jnp.mean((t - mu) ** 2, axis=-1, keepdims=True)
        return (t - mu) * lax.rsqrt(var + eps) * g_ref[...] + b_ref[...]

    y = layer_norm(x + attn, ln1g_ref, ln1b_ref)
    ff = jnp.maximum(linear(y, w1_ref, b1_ref), 0.0)            # ReLU (torch default)
    ff = linear(ff, w2_ref, b2_ref)
    o_ref[...] = layer_norm(y + ff, ln2g_ref, ln2b_ref)


# ----------------------------------------------------------------------------
# Pallas wrapper
# ----------------------------------------------------------------------------
def _pick_batch_tile(B):
    # Fold small batches into one grid step (no per-step overhead); tile
    # larger batches in sublane-aligned chunks of 8 for megacore sharding.
    if B > 8 and B % 8 == 0:
        return 8
    return B


def id_encoder_pallas(tokens2d, pe, mask_add, head_mask, params):
    """tokens2d: (B*U, L) int32 -> (B*U, E) float32 (batch-major rows)."""
    BU, L = tokens2d.shape
    U, E = pe.shape
    B = BU // U

    Bt = _pick_batch_tile(B)
    grid = (B // Bt,)

    weight_names = ("wq", "bq", "wk", "bk", "wv", "bv", "wo", "bo",
                    "ln1_g", "ln1_b", "w1", "b1", "w2", "b2", "ln2_g", "ln2_b")
    weights = [params[k] for k in weight_names]

    def full_spec(shape):
        n = len(shape)
        return pl.BlockSpec(shape, lambda b, n=n: (0,) * n)

    in_specs = ([pl.BlockSpec((Bt * U, L), lambda b: (b, 0)),   # token-id tile
                 full_spec(params["embedding"].shape),          # embedding table
                 full_spec(pe.shape),                           # positional enc
                 pl.BlockSpec((Bt, U), lambda b: (b, 0)),       # padding mask tile
                 full_spec(head_mask.shape)]                    # head column mask
                + [full_spec(w.shape) for w in weights])

    return pl.pallas_call(
        id_encoder_kernel,
        out_shape=jax.ShapeDtypeStruct((BU, E), jnp.float32),
        grid=grid,
        in_specs=in_specs,
        out_specs=pl.BlockSpec((Bt * U, E), lambda b: (b, 0)),
        compiler_params=pltpu.CompilerParams(
            dimension_semantics=("parallel",) if grid[0] > 1 else ("arbitrary",),
            vmem_limit_bytes=32 * 1024 * 1024),
    )(tokens2d, params["embedding"], pe, mask_add, head_mask, *weights)


# ----------------------------------------------------------------------------
# Model glue (positional encoding, masks, parameter init, forward)
# ----------------------------------------------------------------------------
def sinusoidal_pe(length, d_model):
    pos = jnp.arange(length, dtype=jnp.float32)[:, None]
    div = jnp.exp(jnp.arange(0, d_model, 2, dtype=jnp.float32)
                  * (-jnp.log(10000.0) / d_model))
    pe = jnp.zeros((length, d_model), jnp.float32)
    pe = pe.at[:, 0::2].set(jnp.sin(pos * div))
    pe = pe.at[:, 1::2].set(jnp.cos(pos * div))
    return pe


def make_head_mask(num_heads, U, embed_dim):
    # hm[h*U + q, c] = 1.0 iff column c belongs to head h
    dh = embed_dim // num_heads
    row_head = jnp.arange(num_heads * U)[:, None] // U
    col_head = jnp.arange(embed_dim)[None, :] // dh
    return (row_head == col_head).astype(jnp.float32)


def generate_padding_mask_additive(num_usages, max_num_usages, batch):
    # True (padded) usage positions -> -1e9 additive attention bias; (B, U)
    if num_usages is None:
        return jnp.zeros((batch, max_num_usages), jnp.float32)
    u_ids = jnp.arange(max_num_usages)[None, :]
    pad = u_ids >= num_usages[:, None]
    return jnp.where(pad, -1e9, 0.0).astype(jnp.float32)


def init_params(key, vocab_size, pad_idx, E, H, hidden):
    ks = jax.random.split(key, 12)

    def w(k, shape, scale=0.1):
        return jax.random.normal(k, shape, jnp.float32) * scale

    emb = w(ks[0], (vocab_size, E)).at[pad_idx].set(0.0)  # nn.Embedding padding_idx row = 0
    return dict(
        embedding=emb,
        num_heads=H,
        # weights stored pre-transposed: y = x @ W + b
        wq=w(ks[1], (E, E)), bq=w(ks[2], (1, E)),
        wk=w(ks[3], (E, E)), bk=w(ks[4], (1, E)),
        wv=w(ks[5], (E, E)), bv=w(ks[6], (1, E)),
        wo=w(ks[7], (E, E)), bo=w(ks[8], (1, E)),
        ln1_g=jnp.ones((1, E), jnp.float32), ln1_b=jnp.zeros((1, E), jnp.float32),
        w1=w(ks[9], (E, hidden)), b1=w(ks[10], (1, hidden)),
        w2=w(ks[11], (hidden, E)), b2=jnp.zeros((1, E), jnp.float32),
        ln2_g=jnp.ones((1, E), jnp.float32), ln2_b=jnp.zeros((1, E), jnp.float32),
    )


def id_encoder_forward(params, x_tokens, num_usages, max_num_usages):
    """x_tokens: (B, U, L) int32; returns (U, B, E) like the torch module."""
    B, U, L = x_tokens.shape
    E = params["embedding"].shape[1]
    H = params["num_heads"]

    tokens2d = x_tokens.reshape(B * U, L).astype(jnp.int32)      # batch-major rows
    pe = sinusoidal_pe(max_num_usages, E)[:U]                    # (U, E)
    mask_add = generate_padding_mask_additive(num_usages, U, B)  # (B, U)
    head_mask = make_head_mask(H, U, E)                          # (H*U, E)

    out_flat = id_encoder_pallas(tokens2d, pe, mask_add, head_mask, params)
    return jnp.transpose(out_flat.reshape(B, U, E), (1, 0, 2))   # (U, B, E)


# ----------------------------------------------------------------------------
# Pure-JAX reference (standard head reshapes) for validation
# ----------------------------------------------------------------------------
def ref_forward(params, x_tokens, num_usages, max_num_usages):
    B, U, L = x_tokens.shape
    E = params["embedding"].shape[1]
    H = params["num_heads"]
    dh = E // H
    hp = jax.lax.Precision.HIGHEST

    t = jnp.transpose(x_tokens, (1, 0, 2))
    emb = jnp.take(params["embedding"], t, axis=0)
    seq = jnp.mean(emb, axis=2)                                     # (U, B, E)
    pe = sinusoidal_pe(max_num_usages, E)[:U]
    x = jnp.transpose(seq, (1, 0, 2)) + pe[None]                    # (B, U, E)

    def lin(a, w, b):
        return jnp.einsum("bue,ef->buf", a, w, precision=hp) + b

    q = lin(x, params["wq"], params["bq"]).reshape(B, U, H, dh)
    k = lin(x, params["wk"], params["bk"]).reshape(B, U, H, dh)
    v = lin(x, params["wv"], params["bv"]).reshape(B, U, H, dh)
    s = jnp.einsum("buhd,bvhd->bhuv", q, k, precision=hp) / (float(dh) ** 0.5)
    if num_usages is not None:
        u_ids = jnp.arange(U)[None, :]
        pad = u_ids >= num_usages[:, None]
        s = s + jnp.where(pad, -1e9, 0.0)[:, None, None, :]
    p = jax.nn.softmax(s, axis=-1)
    o = jnp.einsum("bhuv,bvhd->buhd", p, v, precision=hp).reshape(B, U, E)
    o = lin(o, params["wo"], params["bo"])

    def ln(y, g, b, eps=1e-5):
        mu = jnp.mean(y, -1, keepdims=True)
        var = jnp.mean((y - mu) ** 2, -1, keepdims=True)
        return (y - mu) / jnp.sqrt(var + eps) * g + b

    y = ln(x + o, params["ln1_g"], params["ln1_b"])
    ff = jnp.maximum(lin(y, params["w1"], params["b1"]), 0.0)
    ff = lin(ff, params["w2"], params["b2"])
    y = ln(y + ff, params["ln2_g"], params["ln2_b"])
    return jnp.transpose(y, (1, 0, 2))


# ----------------------------------------------------------------------------
if __name__ == "__main__":
    # Small config: B=2, max_num_usages U=8, max_sequence_length L=16,
    # vocab=50, pad_idx=0, embedding_dim E=32, heads=4, hidden(FFN)=64,
    # sequence_encoder_type='vanilla', num_usage_layers=1.
    B, U, L = 2, 8, 16
    vocab, pad_idx = 50, 0
    E, H, hidden = 32, 4, 64

    key = jax.random.PRNGKey(0)
    kp, kx = jax.random.split(key)
    params = init_params(kp, vocab, pad_idx, E, H, hidden)
    x_tokens = jax.random.randint(kx, (B, U, L), 0, vocab, dtype=jnp.int32)
    num_usages = jnp.array([U, 5], dtype=jnp.int32)

    # TODO(synk): dropout layers are omitted (eval-mode semantics).
    out = jax.block_until_ready(id_encoder_forward(params, x_tokens, num_usages, U))
    ref = jax.block_until_ready(ref_forward(params, x_tokens, num_usages, U))

    assert out.shape == (U, B, E), out.shape
    err = float(jnp.max(jnp.abs(out - ref)))
    if not err < 2e-2:
        raise AssertionError(f"mismatch vs reference: max abs err {err}")
    print("KERNEL_OK")
</pallas_src>

<mosaic_0001>
module attributes {stable_mosaic.version = 11 : i64} {
  func.func @id_encoder_kernel(%arg0: i32, %arg1: memref<16x16xi32, #tpu.memory_space<vmem>>, %arg2: memref<50x32xf32, #tpu.memory_space<vmem>>, %arg3: memref<8x32xf32, #tpu.memory_space<vmem>>, %arg4: memref<2x8xf32, #tpu.memory_space<vmem>>, %arg5: memref<32x32xf32, #tpu.memory_space<vmem>>, %arg6: memref<32x32xf32, #tpu.memory_space<vmem>>, %arg7: memref<1x32xf32, #tpu.memory_space<vmem>>, %arg8: memref<32x32xf32, #tpu.memory_space<vmem>>, %arg9: memref<1x32xf32, #tpu.memory_space<vmem>>, %arg10: memref<32x32xf32, #tpu.memory_space<vmem>>, %arg11: memref<1x32xf32, #tpu.memory_space<vmem>>, %arg12: memref<32x32xf32, #tpu.memory_space<vmem>>, %arg13: memref<1x32xf32, #tpu.memory_space<vmem>>, %arg14: memref<1x32xf32, #tpu.memory_space<vmem>>, %arg15: memref<1x32xf32, #tpu.memory_space<vmem>>, %arg16: memref<32x64xf32, #tpu.memory_space<vmem>>, %arg17: memref<1x64xf32, #tpu.memory_space<vmem>>, %arg18: memref<64x32xf32, #tpu.memory_space<vmem>>, %arg19: memref<1x32xf32, #tpu.memory_space<vmem>>, %arg20: memref<1x32xf32, #tpu.memory_space<vmem>>, %arg21: memref<1x32xf32, #tpu.memory_space<vmem>>, %arg22: memref<16x32xf32, #tpu.memory_space<vmem>>) attributes {dimension_semantics = [#tpu.dimension_semantics<arbitrary>], iteration_bounds = array<i64: 1>, scalar_prefetch = 0 : i64, scratch_operands = 0 : i64, tpu.core_type = #tpu.core_type<tc>, window_params = [{transform_indices = @transform_0, window_bounds = array<i64: 16, 16>}, {pipeline_mode = #tpu.pipeline_mode<synchronous>, transform_indices = @transform_1, window_bounds = array<i64: 50, 32>}, {pipeline_mode = #tpu.pipeline_mode<synchronous>, transform_indices = @transform_2, window_bounds = array<i64: 8, 32>}, {transform_indices = @transform_3, window_bounds = array<i64: 2, 8>}, {pipeline_mode = #tpu.pipeline_mode<synchronous>, transform_indices = @transform_4, window_bounds = array<i64: 32, 32>}, {pipeline_mode = #tpu.pipeline_mode<synchronous>, transform_indices = @transform_5, window_bounds = array<i64: 32, 32>}, {pipeline_mode = #tpu.pipeline_mode<synchronous>, transform_indices = @transform_6, window_bounds = array<i64: 1, 32>}, {pipeline_mode = #tpu.pipeline_mode<synchronous>, transform_indices = @transform_7, window_bounds = array<i64: 32, 32>}, {pipeline_mode = #tpu.pipeline_mode<synchronous>, transform_indices = @transform_8, window_bounds = array<i64: 1, 32>}, {pipeline_mode = #tpu.pipeline_mode<synchronous>, transform_indices = @transform_9, window_bounds = array<i64: 32, 32>}, {pipeline_mode = #tpu.pipeline_mode<synchronous>, transform_indices = @transform_10, window_bounds = array<i64: 1, 32>}, {pipeline_mode = #tpu.pipeline_mode<synchronous>, transform_indices = @transform_11, window_bounds = array<i64: 32, 32>}, {pipeline_mode = #tpu.pipeline_mode<synchronous>, transform_indices = @transform_12, window_bounds = array<i64: 1, 32>}, {pipeline_mode = #tpu.pipeline_mode<synchronous>, transform_indices = @transform_13, window_bounds = array<i64: 1, 32>}, {pipeline_mode = #tpu.pipeline_mode<synchronous>, transform_indices = @transform_14, window_bounds = array<i64: 1, 32>}, {pipeline_mode = #tpu.pipeline_mode<synchronous>, transform_indices = @transform_15, window_bounds = array<i64: 32, 64>}, {pipeline_mode = #tpu.pipeline_mode<synchronous>, transform_indices = @transform_16, window_bounds = array<i64: 1, 64>}, {pipeline_mode = #tpu.pipeline_mode<synchronous>, transform_indices = @transform_17, window_bounds = array<i64: 64, 32>}, {pipeline_mode = #tpu.pipeline_mode<synchronous>, transform_indices = @transform_18, window_bounds = array<i64: 1, 32>}, {pipeline_mode = #tpu.pipeline_mode<synchronous>, transform_indices = @transform_19, window_bounds = array<i64: 1, 32>}, {pipeline_mode = #tpu.pipeline_mode<synchronous>, transform_indices = @transform_20, window_bounds = array<i64: 1, 32>}, {transform_indices = @transform_21, window_bounds = array<i64: 16, 32>}]} {
    %c0 = arith.constant 0 : index
    %c0_0 = arith.constant 0 : index
    %0 = vector.load %arg1[%c0, %c0_0] : memref<16x16xi32, #tpu.memory_space<vmem>>, vector<16x16xi32>
    %1 = tpu.iota {dimensions = array<i32: 1>} : vector<16x50xi32>
    %2 = vector.extract_strided_slice %0 {offsets = [0, 0], sizes = [16, 1], strides = [1, 1]} : vector<16x16xi32> to vector<16x1xi32>
    %3 = vector.broadcast %2 : vector<16x1xi32> to vector<16x50xi32>
    %4 = arith.cmpi eq, %3, %1 : vector<16x50xi32>
    %5 = arith.extui %4 : vector<16x50xi1> to vector<16x50xi32>
    %6 = arith.sitofp %5 : vector<16x50xi32> to vector<16x50xf32>
    %7 = vector.extract_strided_slice %0 {offsets = [0, 1], sizes = [16, 1], strides = [1, 1]} : vector<16x16xi32> to vector<16x1xi32>
    %8 = vector.broadcast %7 : vector<16x1xi32> to vector<16x50xi32>
    %9 = arith.cmpi eq, %8, %1 : vector<16x50xi32>
    %10 = arith.extui %9 : vector<16x50xi1> to vector<16x50xi32>
    %11 = arith.sitofp %10 : vector<16x50xi32> to vector<16x50xf32>
    %12 = arith.addf %6, %11 : vector<16x50xf32>
    %13 = vector.extract_strided_slice %0 {offsets = [0, 2], sizes = [16, 1], strides = [1, 1]} : vector<16x16xi32> to vector<16x1xi32>
    %14 = vector.broadcast %13 : vector<16x1xi32> to vector<16x50xi32>
    %15 = arith.cmpi eq, %14, %1 : vector<16x50xi32>
    %16 = arith.extui %15 : vector<16x50xi1> to vector<16x50xi32>
    %17 = arith.sitofp %16 : vector<16x50xi32> to vector<16x50xf32>
    %18 = arith.addf %12, %17 : vector<16x50xf32>
    %19 = vector.extract_strided_slice %0 {offsets = [0, 3], sizes = [16, 1], strides = [1, 1]} : vector<16x16xi32> to vector<16x1xi32>
    %20 = vector.broadcast %19 : vector<16x1xi32> to vector<16x50xi32>
    %21 = arith.cmpi eq, %20, %1 : vector<16x50xi32>
    %22 = arith.extui %21 : vector<16x50xi1> to vector<16x50xi32>
    %23 = arith.sitofp %22 : vector<16x50xi32> to vector<16x50xf32>
    %24 = arith.addf %18, %23 : vector<16x50xf32>
    %25 = vector.extract_strided_slice %0 {offsets = [0, 4], sizes = [16, 1], strides = [1, 1]} : vector<16x16xi32> to vector<16x1xi32>
    %26 = vector.broadcast %25 : vector<16x1xi32> to vector<16x50xi32>
    %27 = arith.cmpi eq, %26, %1 : vector<16x50xi32>
    %28 = arith.extui %27 : vector<16x50xi1> to vector<16x50xi32>
    %29 = arith.sitofp %28 : vector<16x50xi32> to vector<16x50xf32>
    %30 = arith.addf %24, %29 : vector<16x50xf32>
    %31 = vector.extract_strided_slice %0 {offsets = [0, 5], sizes = [16, 1], strides = [1, 1]} : vector<16x16xi32> to vector<16x1xi32>
    %32 = vector.broadcast %31 : vector<16x1xi32> to vector<16x50xi32>
    %33 = arith.cmpi eq, %32, %1 : vector<16x50xi32>
    %34 = arith.extui %33 : vector<16x50xi1> to vector<16x50xi32>
    %35 = arith.sitofp %34 : vector<16x50xi32> to vector<16x50xf32>
    %36 = arith.addf %30, %35 : vector<16x50xf32>
    %37 = vector.extract_strided_slice %0 {offsets = [0, 6], sizes = [16, 1], strides = [1, 1]} : vector<16x16xi32> to vector<16x1xi32>
    %38 = vector.broadcast %37 : vector<16x1xi32> to vector<16x50xi32>
    %39 = arith.cmpi eq, %38, %1 : vector<16x50xi32>
    %40 = arith.extui %39 : vector<16x50xi1> to vector<16x50xi32>
    %41 = arith.sitofp %40 : vector<16x50xi32> to vector<16x50xf32>
    %42 = arith.addf %36, %41 : vector<16x50xf32>
    %43 = vector.extract_strided_slice %0 {offsets = [0, 7], sizes = [16, 1], strides = [1, 1]} : vector<16x16xi32> to vector<16x1xi32>
    %44 = vector.broadcast %43 : vector<16x1xi32> to vector<16x50xi32>
    %45 = arith.cmpi eq, %44, %1 : vector<16x50xi32>
    %46 = arith.extui %45 : vector<16x50xi1> to vector<16x50xi32>
    %47 = arith.sitofp %46 : vector<16x50xi32> to vector<16x50xf32>
    %48 = arith.addf %42, %47 : vector<16x50xf32>
    %49 = vector.extract_strided_slice %0 {offsets = [0, 8], sizes = [16, 1], strides = [1, 1]} : vector<16x16xi32> to vector<16x1xi32>
    %50 = vector.broadcast %49 : vector<16x1xi32> to vector<16x50xi32>
    %51 = arith.cmpi eq, %50, %1 : vector<16x50xi32>
    %52 = arith.extui %51 : vector<16x50xi1> to vector<16x50xi32>
    %53 = arith.sitofp %52 : vector<16x50xi32> to vector<16x50xf32>
    %54 = arith.addf %48, %53 : vector<16x50xf32>
    %55 = vector.extract_strided_slice %0 {offsets = [0, 9], sizes = [16, 1], strides = [1, 1]} : vector<16x16xi32> to vector<16x1xi32>
    %56 = vector.broadcast %55 : vector<16x1xi32> to vector<16x50xi32>
    %57 = arith.cmpi eq, %56, %1 : vector<16x50xi32>
    %58 = arith.extui %57 : vector<16x50xi1> to vector<16x50xi32>
    %59 = arith.sitofp %58 : vector<16x50xi32> to vector<16x50xf32>
    %60 = arith.addf %54, %59 : vector<16x50xf32>
    %61 = vector.extract_strided_slice %0 {offsets = [0, 10], sizes = [16, 1], strides = [1, 1]} : vector<16x16xi32> to vector<16x1xi32>
    %62 = vector.broadcast %61 : vector<16x1xi32> to vector<16x50xi32>
    %63 = arith.cmpi eq, %62, %1 : vector<16x50xi32>
    %64 = arith.extui %63 : vector<16x50xi1> to vector<16x50xi32>
    %65 = arith.sitofp %64 : vector<16x50xi32> to vector<16x50xf32>
    %66 = arith.addf %60, %65 : vector<16x50xf32>
    %67 = vector.extract_strided_slice %0 {offsets = [0, 11], sizes = [16, 1], strides = [1, 1]} : vector<16x16xi32> to vector<16x1xi32>
    %68 = vector.broadcast %67 : vector<16x1xi32> to vector<16x50xi32>
    %69 = arith.cmpi eq, %68, %1 : vector<16x50xi32>
    %70 = arith.extui %69 : vector<16x50xi1> to vector<16x50xi32>
    %71 = arith.sitofp %70 : vector<16x50xi32> to vector<16x50xf32>
    %72 = arith.addf %66, %71 : vector<16x50xf32>
    %73 = vector.extract_strided_slice %0 {offsets = [0, 12], sizes = [16, 1], strides = [1, 1]} : vector<16x16xi32> to vector<16x1xi32>
    %74 = vector.broadcast %73 : vector<16x1xi32> to vector<16x50xi32>
    %75 = arith.cmpi eq, %74, %1 : vector<16x50xi32>
    %76 = arith.extui %75 : vector<16x50xi1> to vector<16x50xi32>
    %77 = arith.sitofp %76 : vector<16x50xi32> to vector<16x50xf32>
    %78 = arith.addf %72, %77 : vector<16x50xf32>
    %79 = vector.extract_strided_slice %0 {offsets = [0, 13], sizes = [16, 1], strides = [1, 1]} : vector<16x16xi32> to vector<16x1xi32>
    %80 = vector.broadcast %79 : vector<16x1xi32> to vector<16x50xi32>
    %81 = arith.cmpi eq, %80, %1 : vector<16x50xi32>
    %82 = arith.extui %81 : vector<16x50xi1> to vector<16x50xi32>
    %83 = arith.sitofp %82 : vector<16x50xi32> to vector<16x50xf32>
    %84 = arith.addf %78, %83 : vector<16x50xf32>
    %85 = vector.extract_strided_slice %0 {offsets = [0, 14], sizes = [16, 1], strides = [1, 1]} : vector<16x16xi32> to vector<16x1xi32>
    %86 = vector.broadcast %85 : vector<16x1xi32> to vector<16x50xi32>
    %87 = arith.cmpi eq, %86, %1 : vector<16x50xi32>
    %88 = arith.extui %87 : vector<16x50xi1> to vector<16x50xi32>
    %89 = arith.sitofp %88 : vector<16x50xi32> to vector<16x50xf32>
    %90 = arith.addf %84, %89 : vector<16x50xf32>
    %91 = vector.extract_strided_slice %0 {offsets = [0, 15], sizes = [16, 1], strides = [1, 1]} : vector<16x16xi32> to vector<16x1xi32>
    %92 = vector.broadcast %91 : vector<16x1xi32> to vector<16x50xi32>
    %93 = arith.cmpi eq, %92, %1 : vector<16x50xi32>
    %94 = arith.extui %93 : vector<16x50xi1> to vector<16x50xi32>
    %95 = arith.sitofp %94 : vector<16x50xi32> to vector<16x50xf32>
    %96 = arith.addf %90, %95 : vector<16x50xf32>
    %c0_1 = arith.constant 0 : index
    %c0_2 = arith.constant 0 : index
    %97 = vector.load %arg2[%c0_1, %c0_2] : memref<50x32xf32, #tpu.memory_space<vmem>>, vector<50x32xf32>
    %cst = arith.constant dense<0.000000e+00> : vector<16x32xf32>
    %98 = tpu.matmul %96, %97, %cst {dimension_numbers = #tpu.dot_dimension_numbers<[1], [0], [0], [1], [0, 0, 1, 1], [], []>} : vector<16x50xf32>, vector<50x32xf32>, vector<16x32xf32> -> vector<16x32xf32>
    %cst_3 = arith.constant 6.250000e-02 : f32
    %99 = vector.broadcast %cst_3 : f32 to vector<16x32xf32>
    %100 = arith.mulf %98, %99 : vector<16x32xf32>
    %c0_4 = arith.constant 0 : index
    %c0_5 = arith.constant 0 : index
    %101 = vector.load %arg3[%c0_4, %c0_5] : memref<8x32xf32, #tpu.memory_space<vmem>>, vector<8x32xf32>
    %102 = tpu.concatenate %101, %101 in 0 : vector<8x32xf32>, vector<8x32xf32> -> vector<16x32xf32>
    %103 = arith.addf %100, %102 : vector<16x32xf32>
    %c0_6 = arith.constant 0 : index
    %c0_7 = arith.constant 0 : index
    %104 = vector.load %arg6[%c0_6, %c0_7] : memref<32x32xf32, #tpu.memory_space<vmem>>, vector<32x32xf32>
    %cst_8 = arith.constant dense<0.000000e+00> : vector<16x32xf32>
    %105 = tpu.matmul %103, %104, %cst_8 {dimension_numbers = #tpu.dot_dimension_numbers<[1], [0], [0], [1], [0, 0, 1, 1], [], []>} : vector<16x32xf32>, vector<32x32xf32>, vector<16x32xf32> -> vector<16x32xf32>
    %c0_9 = arith.constant 0 : index
    %c0_10 = arith.constant 0 : index
    %106 = vector.load %arg7[%c0_9, %c0_10] : memref<1x32xf32, #tpu.memory_space<vmem>>, vector<1x32xf32>
    %107 = vector.broadcast %106 : vector<1x32xf32> to vector<16x32xf32>
    %108 = arith.addf %105, %107 : vector<16x32xf32>
    %c0_11 = arith.constant 0 : index
    %c0_12 = arith.constant 0 : index
    %109 = vector.load %arg8[%c0_11, %c0_12] : memref<32x32xf32, #tpu.memory_space<vmem>>, vector<32x32xf32>
    %cst_13 = arith.constant dense<0.000000e+00> : vector<16x32xf32>
    %110 = tpu.matmul %103, %109, %cst_13 {dimension_numbers = #tpu.dot_dimension_numbers<[1], [0], [0], [1], [0, 0, 1, 1], [], []>} : vector<16x32xf32>, vector<32x32xf32>, vector<16x32xf32> -> vector<16x32xf32>
    %c0_14 = arith.constant 0 : index
    %c0_15 = arith.constant 0 : index
    %111 = vector.load %arg9[%c0_14, %c0_15] : memref<1x32xf32, #tpu.memory_space<vmem>>, vector<1x32xf32>
    %112 = vector.broadcast %111 : vector<1x32xf32> to vector<16x32xf32>
    %113 = arith.addf %110, %112 : vector<16x32xf32>
    %c0_16 = arith.constant 0 : index
    %c0_17 = arith.constant 0 : index
    %114 = vector.load %arg10[%c0_16, %c0_17] : memref<32x32xf32, #tpu.memory_space<vmem>>, vector<32x32xf32>
    %cst_18 = arith.constant dense<0.000000e+00> : vector<16x32xf32>
    %115 = tpu.matmul %103, %114, %cst_18 {dimension_numbers = #tpu.dot_dimension_numbers<[1], [0], [0], [1], [0, 0, 1, 1], [], []>} : vector<16x32xf32>, vector<32x32xf32>, vector<16x32xf32> -> vector<16x32xf32>
    %c0_19 = arith.constant 0 : index
    %c0_20 = arith.constant 0 : index
    %116 = vector.load %arg11[%c0_19, %c0_20] : memref<1x32xf32, #tpu.memory_space<vmem>>, vector<1x32xf32>
    %117 = vector.broadcast %116 : vector<1x32xf32> to vector<16x32xf32>
    %118 = arith.addf %115, %117 : vector<16x32xf32>
    %c0_21 = arith.constant 0 : index
    %c0_22 = arith.constant 0 : index
    %119 = vector.load %arg5[%c0_21, %c0_22] : memref<32x32xf32, #tpu.memory_space<vmem>>, vector<32x32xf32>
    %c0_23 = arith.constant 0 : index
    %c0_24 = arith.constant 0 : index
    %120 = vector.load %arg4[%c0_23, %c0_24] : memref<2x8xf32, #tpu.memory_space<vmem>>, vector<2x8xf32>
    %121 = vector.extract_strided_slice %108 {offsets = [0, 0], sizes = [8, 32], strides = [1, 1]} : vector<16x32xf32> to vector<8x32xf32>
    %122 = vector.extract_strided_slice %113 {offsets = [0, 0], sizes = [8, 32], strides = [1, 1]} : vector<16x32xf32> to vector<8x32xf32>
    %123 = vector.extract_strided_slice %118 {offsets = [0, 0], sizes = [8, 32], strides = [1, 1]} : vector<16x32xf32> to vector<8x32xf32>
    %124 = tpu.concatenate %121, %121, %121, %121 in 0 : vector<8x32xf32>, vector<8x32xf32>, vector<8x32xf32>, vector<8x32xf32> -> vector<32x32xf32>
    %125 = arith.mulf %124, %119 : vector<32x32xf32>
    %cst_25 = arith.constant dense<0.000000e+00> : vector<32x8xf32>
    %126 = tpu.matmul %125, %122, %cst_25 {dimension_numbers = #tpu.dot_dimension_numbers<[1], [1], [0], [0], [0, 0, 1, 0], [], []>} : vector<32x32xf32>, vector<8x32xf32>, vector<32x8xf32> -> vector<32x8xf32>
    %cst_26 = arith.constant 0.353553385 : f32
    %127 = vector.broadcast %cst_26 : f32 to vector<32x8xf32>
    %128 = arith.mulf %126, %127 : vector<32x8xf32>
    %129 = vector.extract_strided_slice %120 {offsets = [0, 0], sizes = [1, 8], strides = [1, 1]} : vector<2x8xf32> to vector<1x8xf32>
    %130 = vector.broadcast %129 : vector<1x8xf32> to vector<32x8xf32>
    %131 = arith.addf %128, %130 : vector<32x8xf32>
    %cst_27 = arith.constant dense<0xFF800000> : vector<32xf32>
    %132 = vector.multi_reduction <maximumf>, %131, %cst_27 [1] : vector<32x8xf32> to vector<32xf32>
    %133 = vector.shape_cast %132 : vector<32xf32> to vector<32x1xf32>
    %134 = vector.broadcast %133 : vector<32x1xf32> to vector<32x8xf32>
    %135 = arith.subf %131, %134 : vector<32x8xf32>
    %136 = math.exp %135 : vector<32x8xf32>
    %cst_28 = arith.constant dense<0.000000e+00> : vector<32xf32>
    %137 = vector.multi_reduction <add>, %136, %cst_28 [1] : vector<32x8xf32> to vector<32xf32>
    %138 = vector.shape_cast %137 : vector<32xf32> to vector<32x1xf32>
    %139 = tpu.reciprocal %138 {approx = true} : vector<32x1xf32> -> vector<32x1xf32>
    %140 = vector.broadcast %139 : vector<32x1xf32> to vector<32x8xf32>
    %141 = arith.mulf %136, %140 : vector<32x8xf32>
    %cst_29 = arith.constant dense<0.000000e+00> : vector<32x32xf32>
    %142 = tpu.matmul %141, %123, %cst_29 {dimension_numbers = #tpu.dot_dimension_numbers<[1], [0], [0], [1], [0, 0, 1, 1], [], []>} : vector<32x8xf32>, vector<8x32xf32>, vector<32x32xf32> -> vector<32x32xf32>
    %143 = arith.mulf %142, %119 : vector<32x32xf32>
    %144 = vector.extract_strided_slice %143 {offsets = [0, 0], sizes = [8, 32], strides = [1, 1]} : vector<32x32xf32> to vector<8x32xf32>
    %145 = vector.extract_strided_slice %143 {offsets = [8, 0], sizes = [8, 32], strides = [1, 1]} : vector<32x32xf32> to vector<8x32xf32>
    %146 = arith.addf %144, %145 : vector<8x32xf32>
    %147 = vector.extract_strided_slice %143 {offsets = [16, 0], sizes = [8, 32], strides = [1, 1]} : vector<32x32xf32> to vector<8x32xf32>
    %148 = arith.addf %146, %147 : vector<8x32xf32>
    %149 = vector.extract_strided_slice %143 {offsets = [24, 0], sizes = [8, 32], strides = [1, 1]} : vector<32x32xf32> to vector<8x32xf32>
    %150 = arith.addf %148, %149 : vector<8x32xf32>
    %151 = vector.extract_strided_slice %108 {offsets = [8, 0], sizes = [8, 32], strides = [1, 1]} : vector<16x32xf32> to vector<8x32xf32>
    %152 = vector.extract_strided_slice %113 {offsets = [8, 0], sizes = [8, 32], strides = [1, 1]} : vector<16x32xf32> to vector<8x32xf32>
    %153 = vector.extract_strided_slice %118 {offsets = [8, 0], sizes = [8, 32], strides = [1, 1]} : vector<16x32xf32> to vector<8x32xf32>
    %154 = tpu.concatenate %151, %151, %151, %151 in 0 : vector<8x32xf32>, vector<8x32xf32>, vector<8x32xf32>, vector<8x32xf32> -> vector<32x32xf32>
    %155 = arith.mulf %154, %119 : vector<32x32xf32>
    %cst_30 = arith.constant dense<0.000000e+00> : vector<32x8xf32>
    %156 = tpu.matmul %155, %152, %cst_30 {dimension_numbers = #tpu.dot_dimension_numbers<[1], [1], [0], [0], [0, 0, 1, 0], [], []>} : vector<32x32xf32>, vector<8x32xf32>, vector<32x8xf32> -> vector<32x8xf32>
    %cst_31 = arith.constant 0.353553385 : f32
    %157 = vector.broadcast %cst_31 : f32 to vector<32x8xf32>
    %158 = arith.mulf %156, %157 : vector<32x8xf32>
    %159 = vector.extract_strided_slice %120 {offsets = [1, 0], sizes = [1, 8], strides = [1, 1]} : vector<2x8xf32> to vector<1x8xf32>
    %160 = vector.broadcast %159 : vector<1x8xf32> to vector<32x8xf32>
    %161 = arith.addf %158, %160 : vector<32x8xf32>
    %cst_32 = arith.constant dense<0xFF800000> : vector<32xf32>
    %162 = vector.multi_reduction <maximumf>, %161, %cst_32 [1] : vector<32x8xf32> to vector<32xf32>
    %163 = vector.shape_cast %162 : vector<32xf32> to vector<32x1xf32>
    %164 = vector.broadcast %163 : vector<32x1xf32> to vector<32x8xf32>
    %165 = arith.subf %161, %164 : vector<32x8xf32>
    %166 = math.exp %165 : vector<32x8xf32>
    %cst_33 = arith.constant dense<0.000000e+00> : vector<32xf32>
    %167 = vector.multi_reduction <add>, %166, %cst_33 [1] : vector<32x8xf32> to vector<32xf32>
    %168 = vector.shape_cast %167 : vector<32xf32> to vector<32x1xf32>
    %169 = tpu.reciprocal %168 {approx = true} : vector<32x1xf32> -> vector<32x1xf32>
    %170 = vector.broadcast %169 : vector<32x1xf32> to vector<32x8xf32>
    %171 = arith.mulf %166, %170 : vector<32x8xf32>
    %cst_34 = arith.constant dense<0.000000e+00> : vector<32x32xf32>
    %172 = tpu.matmul %171, %153, %cst_34 {dimension_numbers = #tpu.dot_dimension_numbers<[1], [0], [0], [1], [0, 0, 1, 1], [], []>} : vector<32x8xf32>, vector<8x32xf32>, vector<32x32xf32> -> vector<32x32xf32>
    %173 = arith.mulf %172, %119 : vector<32x32xf32>
    %174 = vector.extract_strided_slice %173 {offsets = [0, 0], sizes = [8, 32], strides = [1, 1]} : vector<32x32xf32> to vector<8x32xf32>
    %175 = vector.extract_strided_slice %173 {offsets = [8, 0], sizes = [8, 32], strides = [1, 1]} : vector<32x32xf32> to vector<8x32xf32>
    %176 = arith.addf %174, %175 : vector<8x32xf32>
    %177 = vector.extract_strided_slice %173 {offsets = [16, 0], sizes = [8, 32], strides = [1, 1]} : vector<32x32xf32> to vector<8x32xf32>
    %178 = arith.addf %176, %177 : vector<8x32xf32>
    %179 = vector.extract_strided_slice %173 {offsets = [24, 0], sizes = [8, 32], strides = [1, 1]} : vector<32x32xf32> to vector<8x32xf32>
    %180 = arith.addf %178, %179 : vector<8x32xf32>
    %181 = tpu.concatenate %150, %180 in 0 : vector<8x32xf32>, vector<8x32xf32> -> vector<16x32xf32>
    %c0_35 = arith.constant 0 : index
    %c0_36 = arith.constant 0 : index
    %182 = vector.load %arg12[%c0_35, %c0_36] : memref<32x32xf32, #tpu.memory_space<vmem>>, vector<32x32xf32>
    %cst_37 = arith.constant dense<0.000000e+00> : vector<16x32xf32>
    %183 = tpu.matmul %181, %182, %cst_37 {dimension_numbers = #tpu.dot_dimension_numbers<[1], [0], [0], [1], [0, 0, 1, 1], [], []>} : vector<16x32xf32>, vector<32x32xf32>, vector<16x32xf32> -> vector<16x32xf32>
    %c0_38 = arith.constant 0 : index
    %c0_39 = arith.constant 0 : index
    %184 = vector.load %arg13[%c0_38, %c0_39] : memref<1x32xf32, #tpu.memory_space<vmem>>, vector<1x32xf32>
    %185 = vector.broadcast %184 : vector<1x32xf32> to vector<16x32xf32>
    %186 = arith.addf %183, %185 : vector<16x32xf32>
    %187 = arith.addf %103, %186 : vector<16x32xf32>
    %cst_40 = arith.constant dense<0.000000e+00> : vector<16xf32>
    %188 = vector.multi_reduction <add>, %187, %cst_40 [1] : vector<16x32xf32> to vector<16xf32>
    %189 = vector.shape_cast %188 : vector<16xf32> to vector<16x1xf32>
    %cst_41 = arith.constant 3.200000e+01 : f32
    %190 = vector.broadcast %cst_41 : f32 to vector<16x1xf32>
    %191 = arith.divf %189, %190 : vector<16x1xf32>
    %192 = vector.broadcast %191 : vector<16x1xf32> to vector<16x32xf32>
    %193 = arith.subf %187, %192 : vector<16x32xf32>
    %194 = arith.mulf %193, %193 : vector<16x32xf32>
    %cst_42 = arith.constant dense<0.000000e+00> : vector<16xf32>
    %195 = vector.multi_reduction <add>, %194, %cst_42 [1] : vector<16x32xf32> to vector<16xf32>
    %196 = vector.shape_cast %195 : vector<16xf32> to vector<16x1xf32>
    %cst_43 = arith.constant 3.200000e+01 : f32
    %197 = vector.broadcast %cst_43 : f32 to vector<16x1xf32>
    %198 = arith.divf %196, %197 : vector<16x1xf32>
    %199 = vector.broadcast %191 : vector<16x1xf32> to vector<16x32xf32>
    %200 = arith.subf %187, %199 : vector<16x32xf32>
    %cst_44 = arith.constant 9.99999974E-6 : f32
    %201 = vector.broadcast %cst_44 : f32 to vector<16x1xf32>
    %202 = arith.addf %198, %201 : vector<16x1xf32>
    %203 = math.rsqrt %202 : vector<16x1xf32>
    %204 = vector.broadcast %203 : vector<16x1xf32> to vector<16x32xf32>
    %205 = arith.mulf %200, %204 : vector<16x32xf32>
    %c0_45 = arith.constant 0 : index
    %c0_46 = arith.constant 0 : index
    %206 = vector.load %arg14[%c0_45, %c0_46] : memref<1x32xf32, #tpu.memory_space<vmem>>, vector<1x32xf32>
    %207 = vector.broadcast %206 : vector<1x32xf32> to vector<16x32xf32>
    %208 = arith.mulf %205, %207 : vector<16x32xf32>
    %c0_47 = arith.constant 0 : index
    %c0_48 = arith.constant 0 : index
    %209 = vector.load %arg15[%c0_47, %c0_48] : memref<1x32xf32, #tpu.memory_space<vmem>>, vector<1x32xf32>
    %210 = vector.broadcast %209 : vector<1x32xf32> to vector<16x32xf32>
    %211 = arith.addf %208, %210 : vector<16x32xf32>
    %c0_49 = arith.constant 0 : index
    %c0_50 = arith.constant 0 : index
    %212 = vector.load %arg16[%c0_49, %c0_50] : memref<32x64xf32, #tpu.memory_space<vmem>>, vector<32x64xf32>
    %cst_51 = arith.constant dense<0.000000e+00> : vector<16x64xf32>
    %213 = tpu.matmul %211, %212, %cst_51 {dimension_numbers = #tpu.dot_dimension_numbers<[1], [0], [0], [1], [0, 0, 1, 1], [], []>} : vector<16x32xf32>, vector<32x64xf32>, vector<16x64xf32> -> vector<16x64xf32>
    %c0_52 = arith.constant 0 : index
    %c0_53 = arith.constant 0 : index
    %214 = vector.load %arg17[%c0_52, %c0_53] : memref<1x64xf32, #tpu.memory_space<vmem>>, vector<1x64xf32>
    %215 = vector.broadcast %214 : vector<1x64xf32> to vector<16x64xf32>
    %216 = arith.addf %213, %215 : vector<16x64xf32>
    %cst_54 = arith.constant 0.000000e+00 : f32
    %217 = vector.broadcast %cst_54 : f32 to vector<16x64xf32>
    %218 = arith.maximumf %216, %217 : vector<16x64xf32>
    %c0_55 = arith.constant 0 : index
    %c0_56 = arith.constant 0 : index
    %219 = vector.load %arg18[%c0_55, %c0_56] : memref<64x32xf32, #tpu.memory_space<vmem>>, vector<64x32xf32>
    %cst_57 = arith.constant dense<0.000000e+00> : vector<16x32xf32>
    %220 = tpu.matmul %218, %219, %cst_57 {dimension_numbers = #tpu.dot_dimension_numbers<[1], [0], [0], [1], [0, 0, 1, 1], [], []>} : vector<16x64xf32>, vector<64x32xf32>, vector<16x32xf32> -> vector<16x32xf32>
    %c0_58 = arith.constant 0 : index
    %c0_59 = arith.constant 0 : index
    %221 = vector.load %arg19[%c0_58, %c0_59] : memref<1x32xf32, #tpu.memory_space<vmem>>, vector<1x32xf32>
    %222 = vector.broadcast %221 : vector<1x32xf32> to vector<16x32xf32>
    %223 = arith.addf %220, %222 : vector<16x32xf32>
    %224 = arith.addf %211, %223 : vector<16x32xf32>
    %cst_60 = arith.constant dense<0.000000e+00> : vector<16xf32>
    %225 = vector.multi_reduction <add>, %224, %cst_60 [1] : vector<16x32xf32> to vector<16xf32>
    %226 = vector.shape_cast %225 : vector<16xf32> to vector<16x1xf32>
    %cst_61 = arith.constant 3.200000e+01 : f32
    %227 = vector.broadcast %cst_61 : f32 to vector<16x1xf32>
    %228 = arith.divf %226, %227 : vector<16x1xf32>
    %229 = vector.broadcast %228 : vector<16x1xf32> to vector<16x32xf32>
    %230 = arith.subf %224, %229 : vector<16x32xf32>
    %231 = arith.mulf %230, %230 : vector<16x32xf32>
    %cst_62 = arith.constant dense<0.000000e+00> : vector<16xf32>
    %232 = vector.multi_reduction <add>, %231, %cst_62 [1] : vector<16x32xf32> to vector<16xf32>
    %233 = vector.shape_cast %232 : vector<16xf32> to vector<16x1xf32>
    %cst_63 = arith.constant 3.200000e+01 : f32
    %234 = vector.broadcast %cst_63 : f32 to vector<16x1xf32>
    %235 = arith.divf %233, %234 : vector<16x1xf32>
    %236 = vector.broadcast %228 : vector<16x1xf32> to vector<16x32xf32>
    %237 = arith.subf %224, %236 : vector<16x32xf32>
    %cst_64 = arith.constant 9.99999974E-6 : f32
    %238 = vector.broadcast %cst_64 : f32 to vector<16x1xf32>
    %239 = arith.addf %235, %238 : vector<16x1xf32>
    %240 = math.rsqrt %239 : vector<16x1xf32>
    %241 = vector.broadcast %240 : vector<16x1xf32> to vector<16x32xf32>
    %242 = arith.mulf %237, %241 : vector<16x32xf32>
    %c0_65 = arith.constant 0 : index
    %c0_66 = arith.constant 0 : index
    %243 = vector.load %arg20[%c0_65, %c0_66] : memref<1x32xf32, #tpu.memory_space<vmem>>, vector<1x32xf32>
    %244 = vector.broadcast %243 : vector<1x32xf32> to vector<16x32xf32>
    %245 = arith.mulf %242, %244 : vector<16x32xf32>
    %c0_67 = arith.constant 0 : index
    %c0_68 = arith.constant 0 : index
    %246 = vector.load %arg21[%c0_67, %c0_68] : memref<1x32xf32, #tpu.memory_space<vmem>>, vector<1x32xf32>
    %247 = vector.broadcast %246 : vector<1x32xf32> to vector<16x32xf32>
    %248 = arith.addf %245, %247 : vector<16x32xf32>
    %c0_69 = arith.constant 0 : index
    %c0_70 = arith.constant 0 : index
    %249 = vector.load %arg22[%c0_69, %c0_70] : memref<16x32xf32, #tpu.memory_space<vmem>>, vector<16x32xf32>
    tpu.vector_store %arg22[%c0_69, %c0_70], %248 {strides = array<i32>} : memref<16x32xf32, #tpu.memory_space<vmem>>, vector<16x32xf32>,
    return
  }
  func.func @transform_0(%arg0: i32) -> (i32, i32) {
    %c0_i32 = arith.constant 0 : i32
    %c0_i32_0 = arith.constant 0 : i32
    return %arg0, %c0_i32 : i32, i32
  }
  func.func @transform_1(%arg0: i32) -> (i32, i32) {
    %c0_i32 = arith.constant 0 : i32
    %c0_i32_0 = arith.constant 0 : i32
    %c0_i32_1 = arith.constant 0 : i32
    return %c0_i32, %c0_i32_0 : i32, i32
  }
  func.func @transform_2(%arg0: i32) -> (i32, i32) {
    %c0_i32 = arith.constant 0 : i32
    %c0_i32_0 = arith.constant 0 : i32
    %c0_i32_1 = arith.constant 0 : i32
    return %c0_i32, %c0_i32_0 : i32, i32
  }
  func.func @transform_3(%arg0: i32) -> (i32, i32) {
    %c0_i32 = arith.constant 0 : i32
    %c0_i32_0 = arith.constant 0 : i32
    return %arg0, %c0_i32 : i32, i32
  }
  func.func @transform_4(%arg0: i32) -> (i32, i32) {
    %c0_i32 = arith.constant 0 : i32
    %c0_i32_0 = arith.constant 0 : i32
    %c0_i32_1 = arith.constant 0 : i32
    return %c0_i32, %c0_i32_0 : i32, i32
  }
  func.func @transform_5(%arg0: i32) -> (i32, i32) {
    %c0_i32 = arith.constant 0 : i32
    %c0_i32_0 = arith.constant 0 : i32
    %c0_i32_1 = arith.constant 0 : i32
    return %c0_i32, %c0_i32_0 : i32, i32
  }
  func.func @transform_6(%arg0: i32) -> (i32, i32) {
    %c0_i32 = arith.constant 0 : i32
    %c0_i32_0 = arith.constant 0 : i32
    %c0_i32_1 = arith.constant 0 : i32
    return %c0_i32, %c0_i32_0 : i32, i32
  }
  func.func @transform_7(%arg0: i32) -> (i32, i32) {
    %c0_i32 = arith.constant 0 : i32
    %c0_i32_0 = arith.constant 0 : i32
    %c0_i32_1 = arith.constant 0 : i32
    return %c0_i32, %c0_i32_0 : i32, i32
  }
  func.func @transform_8(%arg0: i32) -> (i32, i32) {
    %c0_i32 = arith.constant 0 : i32
    %c0_i32_0 = arith.constant 0 : i32
    %c0_i32_1 = arith.constant 0 : i32
    return %c0_i32, %c0_i32_0 : i32, i32
  }
  func.func @transform_9(%arg0: i32) -> (i32, i32) {
    %c0_i32 = arith.constant 0 : i32
    %c0_i32_0 = arith.constant 0 : i32
    %c0_i32_1 = arith.constant 0 : i32
    return %c0_i32, %c0_i32_0 : i32, i32
  }
  func.func @transform_10(%arg0: i32) -> (i32, i32) {
    %c0_i32 = arith.constant 0 : i32
    %c0_i32_0 = arith.constant 0 : i32
    %c0_i32_1 = arith.constant 0 : i32
    return %c0_i32, %c0_i32_0 : i32, i32
  }
  func.func @transform_11(%arg0: i32) -> (i32, i32) {
    %c0_i32 = arith.constant 0 : i32
    %c0_i32_0 = arith.constant 0 : i32
    %c0_i32_1 = arith.constant 0 : i32
    return %c0_i32, %c0_i32_0 : i32, i32
  }
  func.func @transform_12(%arg0: i32) -> (i32, i32) {
    %c0_i32 = arith.constant 0 : i32
    %c0_i32_0 = arith.constant 0 : i32
    %c0_i32_1 = arith.constant 0 : i32
    return %c0_i32, %c0_i32_0 : i32, i32
  }
  func.func @transform_13(%arg0: i32) -> (i32, i32) {
    %c0_i32 = arith.constant 0 : i32
    %c0_i32_0 = arith.constant 0 : i32
    %c0_i32_1 = arith.constant 0 : i32
    return %c0_i32, %c0_i32_0 : i32, i32
  }
  func.func @transform_14(%arg0: i32) -> (i32, i32) {
    %c0_i32 = arith.constant 0 : i32
    %c0_i32_0 = arith.constant 0 : i32
    %c0_i32_1 = arith.constant 0 : i32
    return %c0_i32, %c0_i32_0 : i32, i32
  }
  func.func @transform_15(%arg0: i32) -> (i32, i32) {
    %c0_i32 = arith.constant 0 : i32
    %c0_i32_0 = arith.constant 0 : i32
    %c0_i32_1 = arith.constant 0 : i32
    return %c0_i32, %c0_i32_0 : i32, i32
  }
  func.func @transform_16(%arg0: i32) -> (i32, i32) {
    %c0_i32 = arith.constant 0 : i32
    %c0_i32_0 = arith.constant 0 : i32
    %c0_i32_1 = arith.constant 0 : i32
    return %c0_i32, %c0_i32_0 : i32, i32
  }
  func.func @transform_17(%arg0: i32) -> (i32, i32) {
    %c0_i32 = arith.constant 0 : i32
    %c0_i32_0 = arith.constant 0 : i32
    %c0_i32_1 = arith.constant 0 : i32
    return %c0_i32, %c0_i32_0 : i32, i32
  }
  func.func @transform_18(%arg0: i32) -> (i32, i32) {
    %c0_i32 = arith.constant 0 : i32
    %c0_i32_0 = arith.constant 0 : i32
    %c0_i32_1 = arith.constant 0 : i32
    return %c0_i32, %c0_i32_0 : i32, i32
  }
  func.func @transform_19(%arg0: i32) -> (i32, i32) {
    %c0_i32 = arith.constant 0 : i32
    %c0_i32_0 = arith.constant 0 : i32
    %c0_i32_1 = arith.constant 0 : i32
    return %c0_i32, %c0_i32_0 : i32, i32
  }
  func.func @transform_20(%arg0: i32) -> (i32, i32) {
    %c0_i32 = arith.constant 0 : i32
    %c0_i32_0 = arith.constant 0 : i32
    %c0_i32_1 = arith.constant 0 : i32
    return %c0_i32, %c0_i32_0 : i32, i32
  }
  func.func @transform_21(%arg0: i32) -> (i32, i32) {
    %c0_i32 = arith.constant 0 : i32
    %c0_i32_0 = arith.constant 0 : i32
    return %arg0, %c0_i32 : i32, i32
  }
}

</mosaic_0001>

<llo_original>
// kernel: tpu_custom_call.1
$region0: #{tpu_custom_call.1}
  #allocation0 [shape = 'u32[]', space=smem, size = 0x4, offset = 0x4, fixed_abs, tag = 'smem constant byte address 0x4 - core index']
  #allocation1 [shape = 'u32[72,128]{1,0:T(1,128)}', space=vmem, size = 0x9000, scoped, tag = 'internal scratch']
  %s0 = inlined_call_operand.hbm [shape: s32[16,16], index: 0, kind: input, shape index: {}]
  %s1 = inlined_call_operand.vmem [shape: f32[50,32], index: 1, kind: input, shape index: {}]
  %s2 = inlined_call_operand.hbm [shape: f32[8,32], index: 2, kind: input, shape index: {}]
  %s3 = inlined_call_operand.hbm [shape: f32[2,8], index: 3, kind: input, shape index: {}]
  %s4 = inlined_call_operand.vmem [shape: f32[32,32], index: 4, kind: input, shape index: {}]
  %s5 = inlined_call_operand.vmem [shape: f32[32,32], index: 5, kind: input, shape index: {}]
  %s6 = inlined_call_operand.hbm [shape: f32[1,32], index: 6, kind: input, shape index: {}]
  %s7 = inlined_call_operand.vmem [shape: f32[32,32], index: 7, kind: input, shape index: {}]
  %s8 = inlined_call_operand.hbm [shape: f32[1,32], index: 8, kind: input, shape index: {}]
  %s9 = inlined_call_operand.vmem [shape: f32[32,32], index: 9, kind: input, shape index: {}]
  %s10 = inlined_call_operand.hbm [shape: f32[1,32], index: 10, kind: input, shape index: {}]
  %s11 = inlined_call_operand.vmem [shape: f32[32,32], index: 11, kind: input, shape index: {}]
  %s12 = inlined_call_operand.vmem [shape: f32[1,32], index: 12, kind: input, shape index: {}]
  %s13 = inlined_call_operand.vmem [shape: f32[1,32], index: 13, kind: input, shape index: {}]
  %s14 = inlined_call_operand.vmem [shape: f32[1,32], index: 14, kind: input, shape index: {}]
  %s15 = inlined_call_operand.hbm [shape: f32[32,64], index: 15, kind: input, shape index: {}]
  %s16 = inlined_call_operand.vmem [shape: f32[1,64], index: 16, kind: input, shape index: {}]
  %s17 = inlined_call_operand.vmem [shape: f32[64,32], index: 17, kind: input, shape index: {}]
  %s18 = inlined_call_operand.vmem [shape: f32[1,32], index: 18, kind: input, shape index: {}]
  %s19 = inlined_call_operand.vmem [shape: f32[1,32], index: 19, kind: input, shape index: {}]
  %s20 = inlined_call_operand.vmem [shape: f32[1,32], index: 20, kind: input, shape index: {}]
  %s21 = inlined_call_operand.hbm [shape: f32[16,32], index: 21, kind: output, shape index: {}]
  %s22 = sld [smem:[#allocation0]]
  $region122: #{tpu_custom_call.1} parent=0
    _
  %s24 = ssub.s32 1, %s22
  %s25 = scalar_select 0, %s24, %s22
  $region1: #{tpu_custom_call.1} parent=0
    #allocation2 [shape = 'u8[8192]{0}', space=vmem, size = 0x2000, scoped, tag = 'input window, operand 0, single buffered']
    #allocation3 [shape = 's32[1]{0}', space=sflag, size = 0x4, scoped, tag = 'scoped memory for tpu_custom_call.1']
    #allocation4 [shape = 's32[1]{0}', space=sflag, size = 0x4, scoped, tag = 'scoped memory for tpu_custom_call.1']
    #allocation5 [shape = 'u8[4096]{0}', space=vmem, size = 0x1000, scoped, tag = 'input window, operand 2, single buffered']
    #allocation6 [shape = 's32[1]{0}', space=sflag, size = 0x4, scoped, tag = 'scoped memory for tpu_custom_call.1']
    #allocation7 [shape = 'u8[1024]{0}', space=vmem, size = 0x400, scoped, tag = 'input window, operand 3, single buffered']
    #allocation8 [shape = 'u8[512]{0}', space=vmem, size = 0x400, scoped, tag = 'input window, operand 6, single buffered']
    #allocation9 [shape = 's32[1]{0}', space=sflag, size = 0x4, scoped, tag = 'scoped memory for tpu_custom_call.1']
    #allocation10 [shape = 'u8[512]{0}', space=vmem, size = 0x400, scoped, tag = 'input window, operand 8, single buffered']
    #allocation11 [shape = 'u8[512]{0}', space=vmem, size = 0x400, scoped, tag = 'input window, operand 10, single buffered']
    #allocation12 [shape = 's32[1]{0}', space=sflag, size = 0x4, scoped, tag = 'scoped memory for tpu_custom_call.1']
    #allocation13 [shape = 'u8[16384]{0}', space=vmem, size = 0x4000, scoped, tag = 'input window, operand 15, single buffered']
    #allocation14 [shape = 'u8[8192]{0}', space=vmem, size = 0x2000, scoped, tag = 'output window, operand 0, single buffered']
    %26 = vsyncpa [#allocation3], 0
    %27 = vsyncpa [#allocation6], 0
    %28 = vsyncpa [#allocation9], 0
    %29 = vsyncpa [#allocation12], 0
    %30 = vsyncpa [#allocation4], 0
    // Predicated region
    $region2: #{tpu_custom_call.1} parent=1 // pred_check
      _
    $region3: #{tpu_custom_call.1} parent=1 // pred_check_branch
      %32 = sbr.rel (0) target = $region5
    $region4: #{tpu_custom_call.1} parent=1 // pred_region
      %34 = vsyncadd [#allocation3], 0
      %s35 = sshll.u32 %s0, 4
      %s36 = int_to_ptr.hbm [resolvable:$true] %s35
      %s37 = sshll.u32 [#allocation2], 4
      %s38 = int_to_ptr.vmem [resolvable:$true] %s37
      %43 = dma.hbm_to_vmem [thread:$0]  %s36, 256, %s38, [#allocation3], 128, 128, 8
    $region5: #{tpu_custom_call.1} parent=1 // pred_fallthru
      _
    // Predicated region
    $region6: #{tpu_custom_call.1} parent=1 // pred_check
      _
    $region7: #{tpu_custom_call.1} parent=1 // pred_check_branch
      %45 = sbr.rel (0) target = $region9
    $region8: #{tpu_custom_call.1} parent=1 // pred_region
      _
    $region9: #{tpu_custom_call.1} parent=1 // pred_fallthru
      _
    // Predicated region
    $region10: #{tpu_custom_call.1} parent=1 // pred_check
      _
    $region11: #{tpu_custom_call.1} parent=1 // pred_check_branch
      %47 = sbr.rel (0) target = $region13
    $region12: #{tpu_custom_call.1} parent=1 // pred_region
      %49 = vsyncadd [#allocation6], 0
      %s51 = sshll.u32 %s2, 4
      %s52 = int_to_ptr.hbm [resolvable:$true] %s51
      %s53 = sshll.u32 [#allocation5], 4
      %s54 = int_to_ptr.vmem [resolvable:$true] %s53
      %56 = dma.hbm_to_vmem [thread:$0]  %s52, 128, %s54, [#allocation6]
    $region13: #{tpu_custom_call.1} parent=1 // pred_fallthru
      _
    // Predicated region
    $region14: #{tpu_custom_call.1} parent=1 // pred_check
      _
    $region15: #{tpu_custom_call.1} parent=1 // pred_check_branch
      %58 = sbr.rel (0) target = $region17
    $region16: #{tpu_custom_call.1} parent=1 // pred_region
      %60 = vsyncadd [#allocation6], 0
      %s62 = sshll.u32 %s3, 4
      %s63 = int_to_ptr.hbm [resolvable:$true] %s62
      %s64 = sshll.u32 [#allocation7], 4
      %s65 = int_to_ptr.vmem [resolvable:$true] %s64
      %67 = dma.hbm_to_vmem [thread:$0]  %s63, 32, %s65, [#allocation6]
    $region17: #{tpu_custom_call.1} parent=1 // pred_fallthru
      _
    // Predicated region
    $region18: #{tpu_custom_call.1} parent=1 // pred_check
      _
    $region19: #{tpu_custom_call.1} parent=1 // pred_check_branch
      %69 = sbr.rel (0) target = $region21
    $region20: #{tpu_custom_call.1} parent=1 // pred_region
      _
    $region21: #{tpu_custom_call.1} parent=1 // pred_fallthru
      _
    // Predicated region
    $region22: #{tpu_custom_call.1} parent=1 // pred_check
      _
    $region23: #{tpu_custom_call.1} parent=1 // pred_check_branch
      %71 = sbr.rel (0) target = $region25
    $region24: #{tpu_custom_call.1} parent=1 // pred_region
      _
    $region25: #{tpu_custom_call.1} parent=1 // pred_fallthru
      _
    // Predicated region
    $region26: #{tpu_custom_call.1} parent=1 // pred_check
      _
    $region27: #{tpu_custom_call.1} parent=1 // pred_check_branch
      %73 = sbr.rel (0) target = $region29
    $region28: #{tpu_custom_call.1} parent=1 // pred_region
      %75 = vsyncadd [#allocation9], 0
      %s77 = sshll.u32 %s6, 4
      %s78 = int_to_ptr.hbm [resolvable:$true] %s77
      %s79 = sshll.u32 [#allocation8], 4
      %s80 = int_to_ptr.vmem [resolvable:$true] %s79
      %82 = dma.hbm_to_vmem [thread:$0]  %s78, 16, %s80, [#allocation9]
    $region29: #{tpu_custom_call.1} parent=1 // pred_fallthru
      _
    // Predicated region
    $region30: #{tpu_custom_call.1} parent=1 // pred_check
      _
    $region31: #{tpu_custom_call.1} parent=1 // pred_check_branch
      %84 = sbr.rel (0) target = $region33
    $region32: #{tpu_custom_call.1} parent=1 // pred_region
      _
    $region33: #{tpu_custom_call.1} parent=1 // pred_fallthru
      _
    // Predicated region
    $region34: #{tpu_custom_call.1} parent=1 // pred_check
      _
    $region35: #{tpu_custom_call.1} parent=1 // pred_check_branch
      %86 = sbr.rel (0) target = $region37
    $region36: #{tpu_custom_call.1} parent=1 // pred_region
      %88 = vsyncadd [#allocation9], 0
      %s90 = sshll.u32 %s8, 4
      %s91 = int_to_ptr.hbm [resolvable:$true] %s90
      %s92 = sshll.u32 [#allocation10], 4
      %s93 = int_to_ptr.vmem [resolvable:$true] %s92
      %95 = dma.hbm_to_vmem [thread:$0]  %s91, 16, %s93, [#allocation9]
    $region37: #{tpu_custom_call.1} parent=1 // pred_fallthru
      _
    // Predicated region
    $region38: #{tpu_custom_call.1} parent=1 // pred_check
      _
    $region39: #{tpu_custom_call.1} parent=1 // pred_check_branch
      %97 = sbr.rel (0) target = $region41
    $region40: #{tpu_custom_call.1} parent=1 // pred_region
      _
    $region41: #{tpu_custom_call.1} parent=1 // pred_fallthru
      _
    // Predicated region
    $region42: #{tpu_custom_call.1} parent=1 // pred_check
      _
    $region43: #{tpu_custom_call.1} parent=1 // pred_check_branch
      %99 = sbr.rel (0) target = $region45
    $region44: #{tpu_custom_call.1} parent=1 // pred_region
      %101 = vsyncadd [#allocation12], 0
      %s103 = sshll.u32 %s10, 4
      %s104 = int_to_ptr.hbm [resolvable:$true] %s103
      %s105 = sshll.u32 [#allocation11], 4
      %s106 = int_to_ptr.vmem [resolvable:$true] %s105
      %108 = dma.hbm_to_vmem [thread:$0]  %s104, 16, %s106, [#allocation12]
    $region45: #{tpu_custom_call.1} parent=1 // pred_fallthru
      _
    // Predicated region
    $region46: #{tpu_custom_call.1} parent=1 // pred_check
      _
    $region47: #{tpu_custom_call.1} parent=1 // pred_check_branch
      %110 = sbr.rel (0) target = $region49
    $region48: #{tpu_custom_call.1} parent=1 // pred_region
      _
    $region49: #{tpu_custom_call.1} parent=1 // pred_fallthru
      _
    // Predicated region
    $region50: #{tpu_custom_call.1} parent=1 // pred_check
      _
    $region51: #{tpu_custom_call.1} parent=1 // pred_check_branch
      %112 = sbr.rel (0) target = $region53
    $region52: #{tpu_custom_call.1} parent=1 // pred_region
      _
    $region53: #{tpu_custom_call.1} parent=1 // pred_fallthru
      _
    // Predicated region
    $region54: #{tpu_custom_call.1} parent=1 // pred_check
      _
    $region55: #{tpu_custom_call.1} parent=1 // pred_check_branch
      %114 = sbr.rel (0) target = $region57
    $region56: #{tpu_custom_call.1} parent=1 // pred_region
      _
    $region57: #{tpu_custom_call.1} parent=1 // pred_fallthru
      _
    // Predicated region
    $region58: #{tpu_custom_call.1} parent=1 // pred_check
      _
    $region59: #{tpu_custom_call.1} parent=1 // pred_check_branch
      %116 = sbr.rel (0) target = $region61
    $region60: #{tpu_custom_call.1} parent=1 // pred_region
      _
    $region61: #{tpu_custom_call.1} parent=1 // pred_fallthru
      _
    // Predicated region
    $region62: #{tpu_custom_call.1} parent=1 // pred_check
      _
    $region63: #{tpu_custom_call.1} parent=1 // pred_check_branch
      %118 = sbr.rel (0) target = $region65
    $region64: #{tpu_custom_call.1} parent=1 // pred_region
      %120 = vsyncadd [#allocation12], 0
      %s121 = sshll.u32 %s15, 4
      %s122 = int_to_ptr.hbm [resolvable:$true] %s121
      %s123 = sshll.u32 [#allocation13], 4
      %s124 = int_to_ptr.vmem [resolvable:$true] %s123
      %129 = dma.hbm_to_vmem [thread:$0]  %s122, 512, %s124, [#allocation12], 128, 128, 8
    $region65: #{tpu_custom_call.1} parent=1 // pred_fallthru
      _
    // Predicated region
    $region66: #{tpu_custom_call.1} parent=1 // pred_check
      _
    $region67: #{tpu_custom_call.1} parent=1 // pred_check_branch
      %131 = sbr.rel (0) target = $region69
    $region68: #{tpu_custom_call.1} parent=1 // pred_region
      _
    $region69: #{tpu_custom_call.1} parent=1 // pred_fallthru
      _
    // Predicated region
    $region70: #{tpu_custom_call.1} parent=1 // pred_check
      _
    $region71: #{tpu_custom_call.1} parent=1 // pred_check_branch
      %133 = sbr.rel (0) target = $region73
    $region72: #{tpu_custom_call.1} parent=1 // pred_region
      _
    $region73: #{tpu_custom_call.1} parent=1 // pred_fallthru
      _
    // Predicated region
    $region74: #{tpu_custom_call.1} parent=1 // pred_check
      _
    $region75: #{tpu_custom_call.1} parent=1 // pred_check_branch
      %135 = sbr.rel (0) target = $region77
    $region76: #{tpu_custom_call.1} parent=1 // pred_region
      _
    $region77: #{tpu_custom_call.1} parent=1 // pred_fallthru
      _
    // Predicated region
    $region78: #{tpu_custom_call.1} parent=1 // pred_check
      _
    $region79: #{tpu_custom_call.1} parent=1 // pred_check_branch
      %137 = sbr.rel (0) target = $region81
    $region80: #{tpu_custom_call.1} parent=1 // pred_region
      _
    $region81: #{tpu_custom_call.1} parent=1 // pred_fallthru
      _
    // Predicated region
    $region82: #{tpu_custom_call.1} parent=1 // pred_check
      _
    $region83: #{tpu_custom_call.1} parent=1 // pred_check_branch
      %139 = sbr.rel (0) target = $region85
    $region84: #{tpu_custom_call.1} parent=1 // pred_region
      _
    $region85: #{tpu_custom_call.1} parent=1 // pred_fallthru
      _
    // Predicated region
    $region86: #{tpu_custom_call.1} parent=1 // pred_check
      _
    $region87: #{tpu_custom_call.1} parent=1 // pred_check_branch
      %141 = sbr.rel (0) target = $region89
    $region88: #{tpu_custom_call.1} parent=1 // pred_region
      %143 = dma.done [#allocation3], 256
    $region89: #{tpu_custom_call.1} parent=1 // pred_fallthru
      _
    // Predicated region
    $region90: #{tpu_custom_call.1} parent=1 // pred_check
      _
    $region91: #{tpu_custom_call.1} parent=1 // pred_check_branch
      %145 = sbr.rel (0) target = $region93
    $region92: #{tpu_custom_call.1} parent=1 // pred_region
      %147 = dma.done [#allocation6], 128
    $region93: #{tpu_custom_call.1} parent=1 // pred_fallthru
      _
    // Predicated region
    $region94: #{tpu_custom_call.1} parent=1 // pred_check
      _
    $region95: #{tpu_custom_call.1} parent=1 // pred_check_branch
      %149 = sbr.rel (0) target = $region97
    $region96: #{tpu_custom_call.1} parent=1 // pred_region
      %151 = dma.done [#allocation6], 32
    $region97: #{tpu_custom_call.1} parent=1 // pred_fallthru
      _
    // Predicated region
    $region98: #{tpu_custom_call.1} parent=1 // pred_check
      _
    $region99: #{tpu_custom_call.1} parent=1 // pred_check_branch
      %153 = sbr.rel (0) target = $region101
    $region100: #{tpu_custom_call.1} parent=1 // pred_region
      %155 = dma.done [#allocation9], 16
    $region101: #{tpu_custom_call.1} parent=1 // pred_fallthru
      _
    // Predicated region
    $region102: #{tpu_custom_call.1} parent=1 // pred_check
      _
    $region103: #{tpu_custom_call.1} parent=1 // pred_check_branch
      %157 = sbr.rel (0) target = $region105
    $region104: #{tpu_custom_call.1} parent=1 // pred_region
      %159 = dma.done [#allocation9], 16
    $region105: #{tpu_custom_call.1} parent=1 // pred_fallthru
      _
    // Predicated region
    $region106: #{tpu_custom_call.1} parent=1 // pred_check
      _
    $region107: #{tpu_custom_call.1} parent=1 // pred_check_branch
      %161 = sbr.rel (0) target = $region109
    $region108: #{tpu_custom_call.1} parent=1 // pred_region
      %163 = dma.done [#allocation12], 16
    $region109: #{tpu_custom_call.1} parent=1 // pred_fallthru
      _
    // Predicated region
    $region110: #{tpu_custom_call.1} parent=1 // pred_check
      _
    $region111: #{tpu_custom_call.1} parent=1 // pred_check_branch
      %165 = sbr.rel (0) target = $region113
    $region112: #{tpu_custom_call.1} parent=1 // pred_region
      %167 = dma.done [#allocation12], 512
    $region113: #{tpu_custom_call.1} parent=1 // pred_fallthru
      _
    %v168 = vld [vmem:[#allocation2] sm:$0xff]
    %v169 = vld [vmem:[#allocation2 + $0x8] sm:$0xff]
    %v170 = vlaneseq
    %v171 = vand.u32 %v170, 127
    %172 = vset.pattern.permute.xlu0 0
    %173 = vperm.xlu0 %172, %v168
    %v174 = vpop.permute.xlu0 %173
    %175 = vset.pattern.permute.xlu0 0
    %176 = vperm.xlu0 %175, %v169
    %v177 = vpop.permute.xlu0 %176
    %vm178 = vcmp.eq.s32.totalorder %v174, %v171
    %vm179 = vcmp.eq.s32.totalorder %v177, %v171
    %v180 = vsel %vm178, 1, 0
    %v181 = vsel %vm179, 1, 0
    %v182 = vcvt.s32.f32 %v180
    %v183 = vcvt.s32.f32 %v181
    %184 = vset.pattern.permute.xlu0 1
    %185 = vperm.xlu0 %184, %v168
    %v186 = vpop.permute.xlu0 %185
    %187 = vset.pattern.permute.xlu0 1
    %188 = vperm.xlu0 %187, %v169
    %v189 = vpop.permute.xlu0 %188
    %vm190 = vcmp.eq.s32.totalorder %v186, %v171
    %vm191 = vcmp.eq.s32.totalorder %v189, %v171
    %v192 = vsel %vm190, 1, 0
    %v193 = vsel %vm191, 1, 0
    %v194 = vcvt.s32.f32 %v192
    %v195 = vcvt.s32.f32 %v193
    %v196 = vadd.f32 %v182, %v194
    %v197 = vadd.f32 %v183, %v195
    %198 = vset.pattern.permute.xlu0 2
    %199 = vperm.xlu0 %198, %v168
    %v200 = vpop.permute.xlu0 %199
    %201 = vset.pattern.permute.xlu0 2
    %202 = vperm.xlu0 %201, %v169
    %v203 = vpop.permute.xlu0 %202
    %vm204 = vcmp.eq.s32.totalorder %v200, %v171
    %vm205 = vcmp.eq.s32.totalorder %v203, %v171
    %v206 = vsel %vm204, 1, 0
    %v207 = vsel %vm205, 1, 0
    %v208 = vcvt.s32.f32 %v206
    %v209 = vcvt.s32.f32 %v207
    %v210 = vadd.f32 %v196, %v208
    %v211 = vadd.f32 %v197, %v209
    %212 = vset.pattern.permute.xlu0 3
    %213 = vperm.xlu0 %212, %v168
    %v214 = vpop.permute.xlu0 %213
    %215 = vset.pattern.permute.xlu0 3
    %216 = vperm.xlu0 %215, %v169
    %v217 = vpop.permute.xlu0 %216
    %vm218 = vcmp.eq.s32.totalorder %v214, %v171
    %vm219 = vcmp.eq.s32.totalorder %v217, %v171
    %v220 = vsel %vm218, 1, 0
    %v221 = vsel %vm219, 1, 0
    %v222 = vcvt.s32.f32 %v220
    %v223 = vcvt.s32.f32 %v221
    %v224 = vadd.f32 %v210, %v222
    %v225 = vadd.f32 %v211, %v223
    %226 = vset.pattern.permute.xlu0 4
    %227 = vperm.xlu0 %226, %v168
    %v228 = vpop.permute.xlu0 %227
    %229 = vset.pattern.permute.xlu0 4
    %230 = vperm.xlu0 %229, %v169
    %v231 = vpop.permute.xlu0 %230
    %vm232 = vcmp.eq.s32.totalorder %v228, %v171
    %vm233 = vcmp.eq.s32.totalorder %v231, %v171
    %v234 = vsel %vm232, 1, 0
    %v235 = vsel %vm233, 1, 0
    %v236 = vcvt.s32.f32 %v234
    %v237 = vcvt.s32.f32 %v235
    %v238 = vadd.f32 %v224, %v236
    %v239 = vadd.f32 %v225, %v237
    %240 = vset.pattern.permute.xlu0 5
    %241 = vperm.xlu0 %240, %v168
    %v242 = vpop.permute.xlu0 %241
    %243 = vset.pattern.permute.xlu0 5
    %244 = vperm.xlu0 %243, %v169
    %v245 = vpop.permute.xlu0 %244
    %vm246 = vcmp.eq.s32.totalorder %v242, %v171
    %vm247 = vcmp.eq.s32.totalorder %v245, %v171
    %v248 = vsel %vm246, 1, 0
    %v249 = vsel %vm247, 1, 0
    %v250 = vcvt.s32.f32 %v248
    %v251 = vcvt.s32.f32 %v249
    %v252 = vadd.f32 %v238, %v250
    %v253 = vadd.f32 %v239, %v251
    %254 = vset.pattern.permute.xlu0 6
    %255 = vperm.xlu0 %254, %v168
    %v256 = vpop.permute.xlu0 %255
    %257 = vset.pattern.permute.xlu0 6
    %258 = vperm.xlu0 %257, %v169
    %v259 = vpop.permute.xlu0 %258
    %vm260 = vcmp.eq.s32.totalorder %v256, %v171
    %vm261 = vcmp.eq.s32.totalorder %v259, %v171
    %v262 = vsel %vm260, 1, 0
    %v263 = vsel %vm261, 1, 0
    %v264 = vcvt.s32.f32 %v262
    %v265 = vcvt.s32.f32 %v263
    %v266 = vadd.f32 %v252, %v264
    %v267 = vadd.f32 %v253, %v265
    %268 = vset.pattern.permute.xlu0 7
    %269 = vperm.xlu0 %268, %v168
    %v270 = vpop.permute.xlu0 %269
    %271 = vset.pattern.permute.xlu0 7
    %272 = vperm.xlu0 %271, %v169
    %v273 = vpop.permute.xlu0 %272
    %vm274 = vcmp.eq.s32.totalorder %v270, %v171
    %vm275 = vcmp.eq.s32.totalorder %v273, %v171
    %v276 = vsel %vm274, 1, 0
    %v277 = vsel %vm275, 1, 0
    %v278 = vcvt.s32.f32 %v276
    %v279 = vcvt.s32.f32 %v277
    %v280 = vadd.f32 %v266, %v278
    %v281 = vadd.f32 %v267, %v279
    %282 = vset.pattern.permute.xlu0 8
    %283 = vperm.xlu0 %282, %v168
    %v284 = vpop.permute.xlu0 %283
    %285 = vset.pattern.permute.xlu0 8
    %286 = vperm.xlu0 %285, %v169
    %v287 = vpop.permute.xlu0 %286
    %vm288 = vcmp.eq.s32.totalorder %v284, %v171
    %vm289 = vcmp.eq.s32.totalorder %v287, %v171
    %v290 = vsel %vm288, 1, 0
    %v291 = vsel %vm289, 1, 0
    %v292 = vcvt.s32.f32 %v290
    %v293 = vcvt.s32.f32 %v291
    %v294 = vadd.f32 %v280, %v292
    %v295 = vadd.f32 %v281, %v293
    %296 = vset.pattern.permute.xlu0 9
    %297 = vperm.xlu0 %296, %v168
    %v298 = vpop.permute.xlu0 %297
    %299 = vset.pattern.permute.xlu0 9
    %300 = vperm.xlu0 %299, %v169
    %v301 = vpop.permute.xlu0 %300
    %vm302 = vcmp.eq.s32.totalorder %v298, %v171
    %vm303 = vcmp.eq.s32.totalorder %v301, %v171
    %v304 = vsel %vm302, 1, 0
    %v305 = vsel %vm303, 1, 0
    %v306 = vcvt.s32.f32 %v304
    %v307 = vcvt.s32.f32 %v305
    %v308 = vadd.f32 %v294, %v306
    %v309 = vadd.f32 %v295, %v307
    %310 = vset.pattern.permute.xlu0 10
    %311 = vperm.xlu0 %310, %v168
    %v312 = vpop.permute.xlu0 %311
    %313 = vset.pattern.permute.xlu0 10
    %314 = vperm.xlu0 %313, %v169
    %v315 = vpop.permute.xlu0 %314
    %vm316 = vcmp.eq.s32.totalorder %v312, %v171
    %vm317 = vcmp.eq.s32.totalorder %v315, %v171
    %v318 = vsel %vm316, 1, 0
    %v319 = vsel %vm317, 1, 0
    %v320 = vcvt.s32.f32 %v318
    %v321 = vcvt.s32.f32 %v319
    %v322 = vadd.f32 %v308, %v320
    %v323 = vadd.f32 %v309, %v321
    %324 = vset.pattern.permute.xlu0 11
    %325 = vperm.xlu0 %324, %v168
    %v326 = vpop.permute.xlu0 %325
    %327 = vset.pattern.permute.xlu0 11
    %328 = vperm.xlu0 %327, %v169
    %v329 = vpop.permute.xlu0 %328
    %vm330 = vcmp.eq.s32.totalorder %v326, %v171
    %vm331 = vcmp.eq.s32.totalorder %v329, %v171
    %v332 = vsel %vm330, 1, 0
    %v333 = vsel %vm331, 1, 0
    %v334 = vcvt.s32.f32 %v332
    %v335 = vcvt.s32.f32 %v333
    %v336 = vadd.f32 %v322, %v334
    %v337 = vadd.f32 %v323, %v335
    %338 = vset.pattern.permute.xlu0 12
    %339 = vperm.xlu0 %338, %v168
    %v340 = vpop.permute.xlu0 %339
    %341 = vset.pattern.permute.xlu0 12
    %342 = vperm.xlu0 %341, %v169
    %v343 = vpop.permute.xlu0 %342
    %vm344 = vcmp.eq.s32.totalorder %v340, %v171
    %vm345 = vcmp.eq.s32.totalorder %v343, %v171
    %v346 = vsel %vm344, 1, 0
    %v347 = vsel %vm345, 1, 0
    %v348 = vcvt.s32.f32 %v346
    %v349 = vcvt.s32.f32 %v347
    %v350 = vadd.f32 %v336, %v348
    %v351 = vadd.f32 %v337, %v349
    %352 = vset.pattern.permute.xlu0 13
    %353 = vperm.xlu0 %352, %v168
    %v354 = vpop.permute.xlu0 %353
    %355 = vset.pattern.permute.xlu0 13
    %356 = vperm.xlu0 %355, %v169
    %v357 = vpop.permute.xlu0 %356
    %vm358 = vcmp.eq.s32.totalorder %v354, %v171
    %vm359 = vcmp.eq.s32.totalorder %v357, %v171
    %v360 = vsel %vm358, 1, 0
    %v361 = vsel %vm359, 1, 0
    %v362 = vcvt.s32.f32 %v360
    %v363 = vcvt.s32.f32 %v361
    %v364 = vadd.f32 %v350, %v362
    %v365 = vadd.f32 %v351, %v363
    %366 = vset.pattern.permute.xlu0 14
    %367 = vperm.xlu0 %366, %v168
    %v368 = vpop.permute.xlu0 %367
    %369 = vset.pattern.permute.xlu0 14
    %370 = vperm.xlu0 %369, %v169
    %v371 = vpop.permute.xlu0 %370
    %vm372 = vcmp.eq.s32.totalorder %v368, %v171
    %vm373 = vcmp.eq.s32.totalorder %v371, %v171
    %v374 = vsel %vm372, 1, 0
    %v375 = vsel %vm373, 1, 0
    %v376 = vcvt.s32.f32 %v374
    %v377 = vcvt.s32.f32 %v375
    %v378 = vadd.f32 %v364, %v376
    %v379 = vadd.f32 %v365, %v377
    %380 = vset.pattern.permute.xlu0 15
    %381 = vperm.xlu0 %380, %v168
    %v382 = vpop.permute.xlu0 %381
    %383 = vset.pattern.permute.xlu0 15
    %384 = vperm.xlu0 %383, %v169
    %v385 = vpop.permute.xlu0 %384
    %vm386 = vcmp.eq.s32.totalorder %v382, %v171
    %vm387 = vcmp.eq.s32.totalorder %v385, %v171
    %v388 = vsel %vm386, 1, 0
    %v389 = vsel %vm387, 1, 0
    %v390 = vcvt.s32.f32 %v388
    %v391 = vcvt.s32.f32 %v389
    %v392 = vadd.f32 %v378, %v390
    %v393 = vadd.f32 %v379, %v391
    %v394 = vld [vmem:[%s1] sm:$0xff]
    %v395 = vld [vmem:[%s1 + $0x8] sm:$0xff]
    %v396 = vld [vmem:[%s1 + $0x10] sm:$0xff]
    %v397 = vld [vmem:[%s1 + $0x18] sm:$0xff]
    %v398 = vld [vmem:[%s1 + $0x20] sm:$0xff]
    %v399 = vld [vmem:[%s1 + $0x28] sm:$0xff]
    %v400 = vld [vmem:[%s1 + $0x30] sm:$0x3]
    %vm401 = vcmask 408576
    %v403 = vsel %vm401, %v392, 0
    %v406 = vsel %vm401, %v393, 0
    %vm408 = vcmask 1041408
    %v410 = vsel %vm408, %v400, 0
    %412 = vmatpush.msra.mxu0 0.0
    %413 = vmatpush.msra.mxu0 0.0
    %414 = vmatpush.msra.mxu0 0.0
    %415 = vmatpush.msra.mxu0 0.0
    %416 = vmatpush.msra.mxu0 0.0
    %417 = vmatpush.msra.mxu0 0.0
    %418 = vmatpush.msra.mxu0 0.0
    %419 = vmatpush.msra.mxu0 0.0
    %420 = vmatpush.msra.mxu0 0.0
    %421 = vmatpush.msra.mxu0 %v410
    %422 = vmatpush.msra.mxu0 %v399
    %423 = vmatpush.msra.mxu0 %v398
    %424 = vmatpush.msra.mxu0 %v397
    %425 = vmatpush.msra.mxu0 %v396
    %426 = vmatpush.msra.mxu0 %v395
    %427 = vmatpush.msra.mxu0 %v394
    %428 = vmatmul.f32.gmra.mxu0 %v403
    %v429 = vpop.f32.mrf.mxu0
    %v430 = vadd.f32 0.0, %v429
    %431 = vmatmul.f32.gmra.mxu0 %v406
    %v432 = vpop.f32.mrf.mxu0
    %v433 = vadd.f32 0.0, %v432
    %434 = vdwg.mxu0
    %v435 = vmul.f32 %v430, 0.0625
    %v436 = vmul.f32 %v433, 0.0625
    %v437 = vld [vmem:[#allocation5] sm:$0xff]
    %v438 = vadd.f32 %v435, %v437
    %v439 = vadd.f32 %v436, %v437
    %v440 = vld [vmem:[%s5] sm:$0xff]
    %v441 = vld [vmem:[%s5 + $0x8] sm:$0xff]
    %v442 = vld [vmem:[%s5 + $0x10] sm:$0xff]
    %v443 = vld [vmem:[%s5 + $0x18] sm:$0xff]
    %v444 = vld [vmem:[#allocation8] sm:$0x1]
    %v446 = vperm.slane %v444, 0
    %vm448 = vcmask 261120
    %v450 = vsel %vm448, %v438, 0
    %v453 = vsel %vm448, %v439, 0
    %455 = vmatpush.msra.mxu0 0.0
    %456 = vmatpush.msra.mxu0 0.0
    %457 = vmatpush.msra.mxu0 0.0
    %458 = vmatpush.msra.mxu0 0.0
    %459 = vmatpush.msra.mxu0 0.0
    %460 = vmatpush.msra.mxu0 0.0
    %461 = vmatpush.msra.mxu0 0.0
    %462 = vmatpush.msra.mxu0 0.0
    %463 = vmatpush.msra.mxu0 0.0
    %464 = vmatpush.msra.mxu0 0.0
    %465 = vmatpush.msra.mxu0 0.0
    %466 = vmatpush.msra.mxu0 0.0
    %467 = vmatpush.msra.mxu0 %v443
    %468 = vmatpush.msra.mxu0 %v442
    %469 = vmatpush.msra.mxu0 %v441
    %470 = vmatpush.msra.mxu0 %v440
    %471 = vmatmul.f32.gmra.mxu0 %v450
    %v472 = vpop.f32.mrf.mxu0
    %v473 = vadd.f32 %v446, %v472
    %474 = vmatmul.f32.gmra.mxu0 %v453
    %v475 = vpop.f32.mrf.mxu0
    %v476 = vadd.f32 %v446, %v475
    %477 = vdwg.mxu0
    %v478 = vld [vmem:[%s7] sm:$0xff]
    %v479 = vld [vmem:[%s7 + $0x8] sm:$0xff]
    %v480 = vld [vmem:[%s7 + $0x10] sm:$0xff]
    %v481 = vld [vmem:[%s7 + $0x18] sm:$0xff]
    %v482 = vld [vmem:[#allocation10] sm:$0x1]
    %v484 = vperm.slane %v482, 0
    %486 = vmatpush.msra.mxu0 0.0
    %487 = vmatpush.msra.mxu0 0.0
    %488 = vmatpush.msra.mxu0 0.0
    %489 = vmatpush.msra.mxu0 0.0
    %490 = vmatpush.msra.mxu0 0.0
    %491 = vmatpush.msra.mxu0 0.0
    %492 = vmatpush.msra.mxu0 0.0
    %493 = vmatpush.msra.mxu0 0.0
    %494 = vmatpush.msra.mxu0 0.0
    %495 = vmatpush.msra.mxu0 0.0
    %496 = vmatpush.msra.mxu0 0.0
    %497 = vmatpush.msra.mxu0 0.0
    %498 = vmatpush.msra.mxu0 %v481
    %499 = vmatpush.msra.mxu0 %v480
    %500 = vmatpush.msra.mxu0 %v479
    %501 = vmatpush.msra.mxu0 %v478
    %502 = vmatmul.f32.gmra.mxu0 %v450
    %v503 = vpop.f32.mrf.mxu0
    %v504 = vadd.f32 %v484, %v503
    %505 = vmatmul.f32.gmra.mxu0 %v453
    %v506 = vpop.f32.mrf.mxu0
    %v507 = vadd.f32 %v484, %v506
    %508 = vdwg.mxu0
    %v509 = vld [vmem:[%s9] sm:$0xff]
    %v510 = vld [vmem:[%s9 + $0x8] sm:$0xff]
    %v511 = vld [vmem:[%s9 + $0x10] sm:$0xff]
    %v512 = vld [vmem:[%s9 + $0x18] sm:$0xff]
    %v513 = vld [vmem:[#allocation11] sm:$0x1]
    %v515 = vperm.slane %v513, 0
    %517 = vmatpush.msra.mxu0 0.0
    %518 = vmatpush.msra.mxu0 0.0
    %519 = vmatpush.msra.mxu0 0.0
    %520 = vmatpush.msra.mxu0 0.0
    %521 = vmatpush.msra.mxu0 0.0
    %522 = vmatpush.msra.mxu0 0.0
    %523 = vmatpush.msra.mxu0 0.0
    %524 = vmatpush.msra.mxu0 0.0
    %525 = vmatpush.msra.mxu0 0.0
    %526 = vmatpush.msra.mxu0 0.0
    %527 = vmatpush.msra.mxu0 0.0
    %528 = vmatpush.msra.mxu0 0.0
    %529 = vmatpush.msra.mxu0 %v512
    %530 = vmatpush.msra.mxu0 %v511
    %531 = vmatpush.msra.mxu0 %v510
    %532 = vmatpush.msra.mxu0 %v509
    %533 = vmatmul.f32.gmra.mxu0 %v450
    %v534 = vpop.f32.mrf.mxu0
    %v535 = vadd.f32 %v515, %v534
    %536 = vmatmul.f32.gmra.mxu0 %v453
    %v537 = vpop.f32.mrf.mxu0
    %v538 = vadd.f32 %v515, %v537
    %539 = vdwg.mxu0
    %v540 = vld [vmem:[%s4] sm:$0xff]
    %v541 = vld [vmem:[%s4 + $0x8] sm:$0xff]
    %v542 = vld [vmem:[%s4 + $0x10] sm:$0xff]
    %v543 = vld [vmem:[%s4 + $0x18] sm:$0xff]
    %v544 = vld [vmem:[#allocation7] sm:$0x3]
    %v545 = vmul.f32 %v473, %v540
    %v546 = vmul.f32 %v473, %v541
    %v547 = vmul.f32 %v473, %v542
    %v548 = vmul.f32 %v473, %v543
    %v550 = vsel %vm448, %v545, 0
    %v553 = vsel %vm448, %v546, 0
    %v556 = vsel %vm448, %v547, 0
    %v559 = vsel %vm448, %v548, 0
    %v562 = vsel %vm448, %v504, 0
    %564 = vmatpush.xpose.msra.mxu0 0.0
    %565 = vmatpush.xpose.msra.mxu0 0.0
    %566 = vmatpush.xpose.msra.mxu0 0.0
    %567 = vmatpush.xpose.msra.mxu0 0.0
    %568 = vmatpush.xpose.msra.mxu0 0.0
    %569 = vmatpush.xpose.msra.mxu0 0.0
    %570 = vmatpush.xpose.msra.mxu0 0.0
    %571 = vmatpush.xpose.msra.mxu0 0.0
    %572 = vmatpush.xpose.msra.mxu0 0.0
    %573 = vmatpush.xpose.msra.mxu0 0.0
    %574 = vmatpush.xpose.msra.mxu0 0.0
    %575 = vmatpush.xpose.msra.mxu0 0.0
    %576 = vmatpush.xpose.msra.mxu0 0.0
    %577 = vmatpush.xpose.msra.mxu0 0.0
    %578 = vmatpush.xpose.msra.mxu0 0.0
    %579 = vmatpush.xpose.msra.mxu0 %v562
    %580 = vmatmul.f32.gmra.mxu0 %v550
    %v581 = vpop.f32.mrf.mxu0
    %v582 = vadd.f32 0.0, %v581
    %583 = vmatmul.f32.gmra.mxu0 %v553
    %v584 = vpop.f32.mrf.mxu0
    %v585 = vadd.f32 0.0, %v584
    %586 = vmatmul.f32.gmra.mxu0 %v556
    %v587 = vpop.f32.mrf.mxu0
    %v588 = vadd.f32 0.0, %v587
    %589 = vmatmul.f32.gmra.mxu0 %v559
    %v590 = vpop.f32.mrf.mxu0
    %v591 = vadd.f32 0.0, %v590
    %592 = vdwg.mxu0
    %v593 = vmul.f32 %v582, 0.35355338
    %v594 = vmul.f32 %v585, 0.35355338
    %v595 = vmul.f32 %v588, 0.35355338
    %v596 = vmul.f32 %v591, 0.35355338
    %v597 = vperm.slane %v544, 0
    %v598 = vadd.f32 %v593, %v597
    %v599 = vadd.f32 %v594, %v597
    %v600 = vadd.f32 %v595, %v597
    %v601 = vadd.f32 %v596, %v597
    %vm602 = vcmask 64512
    %v603 = vsel %vm602, %v598, -inf
    %604 = vmax.xlane.f32.xlu0 %v603
    %v605 = vpop.xlane.xlu0 %604
    %v606 = vsel %vm602, %v599, -inf
    %607 = vmax.xlane.f32.xlu0 %v606
    %v608 = vpop.xlane.xlu0 %607
    %v609 = vsel %vm602, %v600, -inf
    %610 = vmax.xlane.f32.xlu0 %v609
    %v611 = vpop.xlane.xlu0 %610
    %v612 = vsel %vm602, %v601, -inf
    %613 = vmax.xlane.f32.xlu0 %v612
    %v614 = vpop.xlane.xlu0 %613
    %v615 = vsub.f32 %v598, %v605
    %v616 = vsub.f32 %v599, %v608
    %v617 = vsub.f32 %v600, %v611
    %v618 = vsub.f32 %v601, %v614
    %v619 = vmul.f32 %v615, 1.442695
    %v620 = vpow.pop %v619
    %v621 = vmul.f32 %v616, 1.442695
    %v622 = vpow.pop %v621
    %v623 = vmul.f32 %v617, 1.442695
    %v624 = vpow.pop %v623
    %v625 = vmul.f32 %v618, 1.442695
    %v626 = vpow.pop %v625
    %v627 = vsel %vm602, %v620, 0.0
    %628 = vadd.xlane.f32.xlu0 %v627
    %v629 = vpop.xlane.xlu0 %628
    %v630 = vsel %vm602, %v622, 0.0
    %631 = vadd.xlane.f32.xlu0 %v630
    %v632 = vpop.xlane.xlu0 %631
    %v633 = vsel %vm602, %v624, 0.0
    %634 = vadd.xlane.f32.xlu0 %v633
    %v635 = vpop.xlane.xlu0 %634
    %v636 = vsel %vm602, %v626, 0.0
    %637 = vadd.xlane.f32.xlu0 %v636
    %v638 = vpop.xlane.xlu0 %637
    %v639 = vrcp.pop %v629
    %v640 = vrcp.pop %v632
    %v641 = vrcp.pop %v635
    %v642 = vrcp.pop %v638
    %v643 = vmul.f32 %v620, %v639
    %v644 = vmul.f32 %v622, %v640
    %v645 = vmul.f32 %v624, %v641
    %v646 = vmul.f32 %v626, %v642
    %v648 = vsel %vm602, %v643, 0
    %v651 = vsel %vm602, %v644, 0
    %v654 = vsel %vm602, %v645, 0
    %v657 = vsel %vm602, %v646, 0
    %659 = vmatpush.msra.mxu0 0.0
    %660 = vmatpush.msra.mxu0 0.0
    %661 = vmatpush.msra.mxu0 0.0
    %662 = vmatpush.msra.mxu0 0.0
    %663 = vmatpush.msra.mxu0 0.0
    %664 = vmatpush.msra.mxu0 0.0
    %665 = vmatpush.msra.mxu0 0.0
    %666 = vmatpush.msra.mxu0 0.0
    %667 = vmatpush.msra.mxu0 0.0
    %668 = vmatpush.msra.mxu0 0.0
    %669 = vmatpush.msra.mxu0 0.0
    %670 = vmatpush.msra.mxu0 0.0
    %671 = vmatpush.msra.mxu0 0.0
    %672 = vmatpush.msra.mxu0 0.0
    %673 = vmatpush.msra.mxu0 0.0
    %674 = vmatpush.msra.mxu0 %v535
    %675 = vmatmul.f32.gmra.mxu0 %v648
    %v676 = vpop.f32.mrf.mxu0
    %v677 = vadd.f32 0.0, %v676
    %678 = vmatmul.f32.gmra.mxu0 %v651
    %v679 = vpop.f32.mrf.mxu0
    %v680 = vadd.f32 0.0, %v679
    %681 = vmatmul.f32.gmra.mxu0 %v654
    %v682 = vpop.f32.mrf.mxu0
    %v683 = vadd.f32 0.0, %v682
    %684 = vmatmul.f32.gmra.mxu0 %v657
    %v685 = vpop.f32.mrf.mxu0
    %v686 = vadd.f32 0.0, %v685
    %687 = vdwg.mxu0
    %v688 = vmul.f32 %v677, %v540
    %v689 = vmul.f32 %v680, %v541
    %v690 = vmul.f32 %v683, %v542
    %v691 = vmul.f32 %v686, %v543
    %v692 = vadd.f32 %v688, %v689
    %v693 = vadd.f32 %v692, %v690
    %v694 = vadd.f32 %v693, %v691
    %v695 = vmul.f32 %v476, %v540
    %v696 = vmul.f32 %v476, %v541
    %v697 = vmul.f32 %v476, %v542
    %v698 = vmul.f32 %v476, %v543
    %v700 = vsel %vm448, %v695, 0
    %v703 = vsel %vm448, %v696, 0
    %v706 = vsel %vm448, %v697, 0
    %v709 = vsel %vm448, %v698, 0
    %v712 = vsel %vm448, %v507, 0
    %714 = vmatpush.xpose.msra.mxu0 0.0
    %715 = vmatpush.xpose.msra.mxu0 0.0
    %716 = vmatpush.xpose.msra.mxu0 0.0
    %717 = vmatpush.xpose.msra.mxu0 0.0
    %718 = vmatpush.xpose.msra.mxu0 0.0
    %719 = vmatpush.xpose.msra.mxu0 0.0
    %720 = vmatpush.xpose.msra.mxu0 0.0
    %721 = vmatpush.xpose.msra.mxu0 0.0
    %722 = vmatpush.xpose.msra.mxu0 0.0
    %723 = vmatpush.xpose.msra.mxu0 0.0
    %724 = vmatpush.xpose.msra.mxu0 0.0
    %725 = vmatpush.xpose.msra.mxu0 0.0
    %726 = vmatpush.xpose.msra.mxu0 0.0
    %727 = vmatpush.xpose.msra.mxu0 0.0
    %728 = vmatpush.xpose.msra.mxu0 0.0
    %729 = vmatpush.xpose.msra.mxu0 %v712
    %730 = vmatmul.f32.gmra.mxu0 %v700
    %v731 = vpop.f32.mrf.mxu0
    %v732 = vadd.f32 0.0, %v731
    %733 = vmatmul.f32.gmra.mxu0 %v703
    %v734 = vpop.f32.mrf.mxu0
    %v735 = vadd.f32 0.0, %v734
    %736 = vmatmul.f32.gmra.mxu0 %v706
    %v737 = vpop.f32.mrf.mxu0
    %v738 = vadd.f32 0.0, %v737
    %739 = vmatmul.f32.gmra.mxu0 %v709
    %v740 = vpop.f32.mrf.mxu0
    %v741 = vadd.f32 0.0, %v740
    %742 = vdwg.mxu0
    %v743 = vmul.f32 %v732, 0.35355338
    %v744 = vmul.f32 %v735, 0.35355338
    %v745 = vmul.f32 %v738, 0.35355338
    %v746 = vmul.f32 %v741, 0.35355338
    %v747 = vperm.slane %v544, 1
    %v748 = vadd.f32 %v743, %v747
    %v749 = vadd.f32 %v744, %v747
    %v750 = vadd.f32 %v745, %v747
    %v751 = vadd.f32 %v746, %v747
    %v752 = vsel %vm602, %v748, -inf
    %753 = vmax.xlane.f32.xlu0 %v752
    %v754 = vpop.xlane.xlu0 %753
    %v755 = vsel %vm602, %v749, -inf
    %756 = vmax.xlane.f32.xlu0 %v755
    %v757 = vpop.xlane.xlu0 %756
    %v758 = vsel %vm602, %v750, -inf
    %759 = vmax.xlane.f32.xlu0 %v758
    %v760 = vpop.xlane.xlu0 %759
    %v761 = vsel %vm602, %v751, -inf
    %762 = vmax.xlane.f32.xlu0 %v761
    %v763 = vpop.xlane.xlu0 %762
    %v764 = vsub.f32 %v748, %v754
    %v765 = vsub.f32 %v749, %v757
    %v766 = vsub.f32 %v750, %v760
    %v767 = vsub.f32 %v751, %v763
    %v768 = vmul.f32 %v764, 1.442695
    %v769 = vpow.pop %v768
    %v770 = vmul.f32 %v765, 1.442695
    %v771 = vpow.pop %v770
    %v772 = vmul.f32 %v766, 1.442695
    %v773 = vpow.pop %v772
    %v774 = vmul.f32 %v767, 1.442695
    %v775 = vpow.pop %v774
    %v776 = vsel %vm602, %v769, 0.0
    %777 = vadd.xlane.f32.xlu0 %v776
    %v778 = vpop.xlane.xlu0 %777
    %v779 = vsel %vm602, %v771, 0.0
    %780 = vadd.xlane.f32.xlu0 %v779
    %v781 = vpop.xlane.xlu0 %780
    %v782 = vsel %vm602, %v773, 0.0
    %783 = vadd.xlane.f32.xlu0 %v782
    %v784 = vpop.xlane.xlu0 %783
    %v785 = vsel %vm602, %v775, 0.0
    %786 = vadd.xlane.f32.xlu0 %v785
    %v787 = vpop.xlane.xlu0 %786
    %v788 = vrcp.pop %v778
    %v789 = vrcp.pop %v781
    %v790 = vrcp.pop %v784
    %v791 = vrcp.pop %v787
    %v792 = vmul.f32 %v769, %v788
    %v793 = vmul.f32 %v771, %v789
    %v794 = vmul.f32 %v773, %v790
    %v795 = vmul.f32 %v775, %v791
    %v797 = vsel %vm602, %v792, 0
    %v800 = vsel %vm602, %v793, 0
    %v803 = vsel %vm602, %v794, 0
    %v806 = vsel %vm602, %v795, 0
    %808 = vmatpush.msra.mxu0 0.0
    %809 = vmatpush.msra.mxu0 0.0
    %810 = vmatpush.msra.mxu0 0.0
    %811 = vmatpush.msra.mxu0 0.0
    %812 = vmatpush.msra.mxu0 0.0
    %813 = vmatpush.msra.mxu0 0.0
    %814 = vmatpush.msra.mxu0 0.0
    %815 = vmatpush.msra.mxu0 0.0
    %816 = vmatpush.msra.mxu0 0.0
    %817 = vmatpush.msra.mxu0 0.0
    %818 = vmatpush.msra.mxu0 0.0
    %819 = vmatpush.msra.mxu0 0.0
    %820 = vmatpush.msra.mxu0 0.0
    %821 = vmatpush.msra.mxu0 0.0
    %822 = vmatpush.msra.mxu0 0.0
    %823 = vmatpush.msra.mxu0 %v538
    %824 = vmatmul.f32.gmra.mxu0 %v797
    %v825 = vpop.f32.mrf.mxu0
    %v826 = vadd.f32 0.0, %v825
    %827 = vmatmul.f32.gmra.mxu0 %v800
    %v828 = vpop.f32.mrf.mxu0
    %v829 = vadd.f32 0.0, %v828
    %830 = vmatmul.f32.gmra.mxu0 %v803
    %v831 = vpop.f32.mrf.mxu0
    %v832 = vadd.f32 0.0, %v831
    %833 = vmatmul.f32.gmra.mxu0 %v806
    %v834 = vpop.f32.mrf.mxu0
    %v835 = vadd.f32 0.0, %v834
    %836 = vdwg.mxu0
    %v837 = vmul.f32 %v826, %v540
    %v838 = vmul.f32 %v829, %v541
    %v839 = vmul.f32 %v832, %v542
    %v840 = vmul.f32 %v835, %v543
    %v841 = vadd.f32 %v837, %v838
    %v842 = vadd.f32 %v841, %v839
    %v843 = vadd.f32 %v842, %v840
    %v844 = vld [vmem:[%s11] sm:$0xff]
    %v845 = vld [vmem:[%s11 + $0x8] sm:$0xff]
    %v846 = vld [vmem:[%s11 + $0x10] sm:$0xff]
    %v847 = vld [vmem:[%s11 + $0x18] sm:$0xff]
    %v848 = vld [vmem:[%s12] sm:$0x1]
    %v850 = vperm.slane %v848, 0
    %v853 = vsel %vm448, %v694, 0
    %v856 = vsel %vm448, %v843, 0
    %858 = vmatpush.msra.mxu0 0.0
    %859 = vmatpush.msra.mxu0 0.0
    %860 = vmatpush.msra.mxu0 0.0
    %861 = vmatpush.msra.mxu0 0.0
    %862 = vmatpush.msra.mxu0 0.0
    %863 = vmatpush.msra.mxu0 0.0
    %864 = vmatpush.msra.mxu0 0.0
    %865 = vmatpush.msra.mxu0 0.0
    %866 = vmatpush.msra.mxu0 0.0
    %867 = vmatpush.msra.mxu0 0.0
    %868 = vmatpush.msra.mxu0 0.0
    %869 = vmatpush.msra.mxu0 0.0
    %870 = vmatpush.msra.mxu0 %v847
    %871 = vmatpush.msra.mxu0 %v846
    %872 = vmatpush.msra.mxu0 %v845
    %873 = vmatpush.msra.mxu0 %v844
    %874 = vmatmul.f32.gmra.mxu0 %v853
    %v875 = vpop.f32.mrf.mxu0
    %v876 = vadd.f32 %v850, %v875
    %877 = vmatmul.f32.gmra.mxu0 %v856
    %v878 = vpop.f32.mrf.mxu0
    %v879 = vadd.f32 %v850, %v878
    %880 = vdwg.mxu0
    %v881 = vadd.f32 %v438, %v876
    %v882 = vadd.f32 %v439, %v879
    %v883 = vsel %vm448, %v881, 0.0
    %884 = vadd.xlane.f32.xlu0 %v883
    %v885 = vpop.xlane.xlu0 %884
    %v886 = vsel %vm448, %v882, 0.0
    %887 = vadd.xlane.f32.xlu0 %v886
    %v888 = vpop.xlane.xlu0 %887
    %v889 = vrcp.pop 32.0
    %v890 = vmul.f32 32.0, %v889
    %v891 = vsub.f32 1.0, %v890
    %v892 = vmul.f32 %v889, %v891
    %v893 = vadd.f32 %v889, %v892
    %vm894 = vweird.f32 %v889
    %v895 = vsel %vm894, %v889, %v893
    %v896 = vmul.f32 %v885, %v895
    %v897 = vmul.f32 %v888, %v895
    %v898 = vsub.f32 %v881, %v896
    %v899 = vsub.f32 %v882, %v897
    %v900 = vmul.f32 %v898, %v898
    %v901 = vmul.f32 %v899, %v899
    %v902 = vsel %vm448, %v900, 0.0
    %903 = vadd.xlane.f32.xlu0 %v902
    %v904 = vpop.xlane.xlu0 %903
    %v905 = vsel %vm448, %v901, 0.0
    %906 = vadd.xlane.f32.xlu0 %v905
    %v907 = vpop.xlane.xlu0 %906
    %v908 = vmul.f32 %v904, %v895
    %v909 = vmul.f32 %v907, %v895
    %v910 = vadd.f32 %v908, 1e-05
    %v911 = vadd.f32 %v909, 1e-05
    %v912 = vrsqrt.pop %v910
    %v913 = vmul.f32 %v912, %v910
    %v914 = vmul.f32 %v913, %v912
    %v915 = vmul.f32 0.5, %v914
    %v916 = vsub.f32 1.5, %v915
    %v917 = vmul.f32 %v912, %v916
    %vm918 = vweird.f32 %v910
    %vm919 = vweird.f32 %v912
    %vm920 = vmor %vm918, %vm919
    %v921 = vsel %vm920, %v912, %v917
    %v922 = vrsqrt.pop %v911
    %v923 = vmul.f32 %v922, %v911
    %v924 = vmul.f32 %v923, %v922
    %v925 = vmul.f32 0.5, %v924
    %v926 = vsub.f32 1.5, %v925
    %v927 = vmul.f32 %v922, %v926
    %vm928 = vweird.f32 %v911
    %vm929 = vweird.f32 %v922
    %vm930 = vmor %vm928, %vm929
    %v931 = vsel %vm930, %v922, %v927
    %v932 = vmul.f32 %v898, %v921
    %v933 = vmul.f32 %v899, %v931
    %v934 = vld [vmem:[%s13] sm:$0x1]
    %v936 = vperm.slane %v934, 0
    %v938 = vmul.f32 %v932, %v936
    %v939 = vmul.f32 %v933, %v936
    %v940 = vld [vmem:[%s14] sm:$0x1]
    %v942 = vperm.slane %v940, 0
    %v944 = vadd.f32 %v938, %v942
    %v945 = vadd.f32 %v939, %v942
    %v946 = vld [vmem:[#allocation13] sm:$0xff]
    %v947 = vld [vmem:[#allocation13 + $0x8] sm:$0xff]
    %v948 = vld [vmem:[#allocation13 + $0x10] sm:$0xff]
    %v949 = vld [vmem:[#allocation13 + $0x18] sm:$0xff]
    %v950 = vld [vmem:[%s16] sm:$0x1]
    %v952 = vperm.slane %v950, 0
    %v955 = vsel %vm448, %v944, 0
    %v958 = vsel %vm448, %v945, 0
    %960 = vmatpush.msra.mxu0 0.0
    %961 = vmatpush.msra.mxu0 0.0
    %962 = vmatpush.msra.mxu0 0.0
    %963 = vmatpush.msra.mxu0 0.0
    %964 = vmatpush.msra.mxu0 0.0
    %965 = vmatpush.msra.mxu0 0.0
    %966 = vmatpush.msra.mxu0 0.0
    %967 = vmatpush.msra.mxu0 0.0
    %968 = vmatpush.msra.mxu0 0.0
    %969 = vmatpush.msra.mxu0 0.0
    %970 = vmatpush.msra.mxu0 0.0
    %971 = vmatpush.msra.mxu0 0.0
    %972 = vmatpush.msra.mxu0 %v949
    %973 = vmatpush.msra.mxu0 %v948
    %974 = vmatpush.msra.mxu0 %v947
    %975 = vmatpush.msra.mxu0 %v946
    %976 = vmatmul.f32.gmra.mxu0 %v955
    %v977 = vpop.f32.mrf.mxu0
    %v978 = vadd.f32 %v952, %v977
    %979 = vmatmul.f32.gmra.mxu0 %v958
    %v980 = vpop.f32.mrf.mxu0
    %v981 = vadd.f32 %v952, %v980
    %982 = vdwg.mxu0
    %v983 = vmax.f32 %v978, 0.0
    %v984 = vmax.f32 %v981, 0.0
    %v985 = vld [vmem:[%s17] sm:$0xff]
    %v986 = vld [vmem:[%s17 + $0x8] sm:$0xff]
    %v987 = vld [vmem:[%s17 + $0x10] sm:$0xff]
    %v988 = vld [vmem:[%s17 + $0x18] sm:$0xff]
    %v989 = vld [vmem:[%s17 + $0x20] sm:$0xff]
    %v990 = vld [vmem:[%s17 + $0x28] sm:$0xff]
    %v991 = vld [vmem:[%s17 + $0x30] sm:$0xff]
    %v992 = vld [vmem:[%s17 + $0x38] sm:$0xff]
    %v993 = vld [vmem:[%s18] sm:$0x1]
    %v995 = vperm.slane %v993, 0
    %vm997 = vcmask 523264
    %v999 = vsel %vm997, %v983, 0
    %v1002 = vsel %vm997, %v984, 0
    %1004 = vmatpush.msra.mxu0 0.0
    %1005 = vmatpush.msra.mxu0 0.0
    %1006 = vmatpush.msra.mxu0 0.0
    %1007 = vmatpush.msra.mxu0 0.0
    %1008 = vmatpush.msra.mxu0 0.0
    %1009 = vmatpush.msra.mxu0 0.0
    %1010 = vmatpush.msra.mxu0 0.0
    %1011 = vmatpush.msra.mxu0 0.0
    %1012 = vmatpush.msra.mxu0 %v992
    %1013 = vmatpush.msra.mxu0 %v991
    %1014 = vmatpush.msra.mxu0 %v990
    %1015 = vmatpush.msra.mxu0 %v989
    %1016 = vmatpush.msra.mxu0 %v988
    %1017 = vmatpush.msra.mxu0 %v987
    %1018 = vmatpush.msra.mxu0 %v986
    %1019 = vmatpush.msra.mxu0 %v985
    %1020 = vmatmul.f32.gmra.mxu0 %v999
    %v1021 = vpop.f32.mrf.mxu0
    %v1022 = vadd.f32 %v995, %v1021
    %1023 = vmatmul.f32.gmra.mxu0 %v1002
    %v1024 = vpop.f32.mrf.mxu0
    %v1025 = vadd.f32 %v995, %v1024
    %1026 = vdwg.mxu0
    %v1027 = vadd.f32 %v944, %v1022
    %v1028 = vadd.f32 %v945, %v1025
    %v1029 = vsel %vm448, %v1027, 0.0
    %1030 = vadd.xlane.f32.xlu0 %v1029
    %v1031 = vpop.xlane.xlu0 %1030
    %v1032 = vsel %vm448, %v1028, 0.0
    %1033 = vadd.xlane.f32.xlu0 %v1032
    %v1034 = vpop.xlane.xlu0 %1033
    %v1035 = vmul.f32 %v1031, %v895
    %v1036 = vmul.f32 %v1034, %v895
    %v1037 = vsub.f32 %v1027, %v1035
    %v1038 = vsub.f32 %v1028, %v1036
    %v1039 = vmul.f32 %v1037, %v1037
    %v1040 = vmul.f32 %v1038, %v1038
    %v1041 = vsel %vm448, %v1039, 0.0
    %1042 = vadd.xlane.f32.xlu0 %v1041
    %v1043 = vpop.xlane.xlu0 %1042
    %v1044 = vsel %vm448, %v1040, 0.0
    %1045 = vadd.xlane.f32.xlu0 %v1044
    %v1046 = vpop.xlane.xlu0 %1045
    %v1047 = vmul.f32 %v1043, %v895
    %v1048 = vmul.f32 %v1046, %v895
    %v1049 = vadd.f32 %v1047, 1e-05
    %v1050 = vadd.f32 %v1048, 1e-05
    %v1051 = vrsqrt.pop %v1049
    %v1052 = vmul.f32 %v1051, %v1049
    %v1053 = vmul.f32 %v1052, %v1051
    %v1054 = vmul.f32 0.5, %v1053
    %v1055 = vsub.f32 1.5, %v1054
    %v1056 = vmul.f32 %v1051, %v1055
    %vm1057 = vweird.f32 %v1049
    %vm1058 = vweird.f32 %v1051
    %vm1059 = vmor %vm1057, %vm1058
    %v1060 = vsel %vm1059, %v1051, %v1056
    %v1061 = vrsqrt.pop %v1050
    %v1062 = vmul.f32 %v1061, %v1050
    %v1063 = vmul.f32 %v1062, %v1061
    %v1064 = vmul.f32 0.5, %v1063
    %v1065 = vsub.f32 1.5, %v1064
    %v1066 = vmul.f32 %v1061, %v1065
    %vm1067 = vweird.f32 %v1050
    %vm1068 = vweird.f32 %v1061
    %vm1069 = vmor %vm1067, %vm1068
    %v1070 = vsel %vm1069, %v1061, %v1066
    %v1071 = vmul.f32 %v1037, %v1060
    %v1072 = vmul.f32 %v1038, %v1070
    %v1073 = vld [vmem:[%s19] sm:$0x1]
    %v1075 = vperm.slane %v1073, 0
    %v1077 = vmul.f32 %v1071, %v1075
    %v1078 = vmul.f32 %v1072, %v1075
    %v1079 = vld [vmem:[%s20] sm:$0x1]
    %v1081 = vperm.slane %v1079, 0
    %v1083 = vadd.f32 %v1077, %v1081
    %v1084 = vadd.f32 %v1078, %v1081
    %1085 = vst.msk [vmem:[#allocation14] sm:$0xff] %vm448, %v1083
    %1086 = vst.msk [vmem:[#allocation14 + $0x8] sm:$0xff] %vm448, %v1084
    // Predicated region
    $region114: #{tpu_custom_call.1} parent=1 // pred_check
      _
    $region115: #{tpu_custom_call.1} parent=1 // pred_check_branch
      %1088 = sbr.rel (0) target = $region117
    $region116: #{tpu_custom_call.1} parent=1 // pred_region
      %1090 = vsyncadd [#allocation4], 0
      %s1091 = sshll.u32 [#allocation14], 4
      %s1092 = int_to_ptr.vmem [resolvable:$true] %s1091
      %s1093 = sshll.u32 %s21, 4
      %s1094 = int_to_ptr.hbm [resolvable:$true] %s1093
      %1099 = dma.vmem_to_hbm [thread:$0]  %s1092, 256, %s1094, [#allocation4], 128, 128, 8
    $region117: #{tpu_custom_call.1} parent=1 // pred_fallthru
      _
    // Predicated region
    $region118: #{tpu_custom_call.1} parent=1 // pred_check
      _
    $region119: #{tpu_custom_call.1} parent=1 // pred_check_branch
      %1101 = sbr.rel (0) target = $region121
    $region120: #{tpu_custom_call.1} parent=1 // pred_region
      %1103 = dma.done [#allocation4], 256
    $region121: #{tpu_custom_call.1} parent=1 // pred_fallthru
      _
    %1104 = vsyncpa [#allocation3], 1
    %1105 = vsyncpa [#allocation6], 1
    %1106 = vsyncpa [#allocation9], 1
    %1107 = vsyncpa [#allocation12], 1
    %1108 = vsyncpa [#allocation4], 1

</llo_original>
